<compile_context>
chip_gen: v7x
topology: tpu7x:2x2x1
jax: 0.10.0
libtpu: 0.0.40
codegen_flags: <defaults>
</compile_context>

<pallas_src>
import functools

import jax
import jax.numpy as jnp
from jax import lax
from jax.experimental import pallas as pl
from jax.experimental.pallas import tpu as pltpu

EPS = 1e-12            # BERT LayerNorm eps
LOGIT_PAD = 128        # lane-dense classifier output width (sliced to num_labels)
GELU_TANH_APPROX = False  # True -> jax.nn.gelu(approximate=True) (tanh, EUP-friendly)


# ----------------------------------------------------------------------------
# In-kernel helpers (operate on VMEM-loaded f32 values)
# ----------------------------------------------------------------------------
def _gelu(y):
    if GELU_TANH_APPROX:
        return jax.nn.gelu(y, approximate=True)
    # exact erf-based GELU (HF BERT parity)
    return 0.5 * y * (1.0 + lax.erf(y * jnp.float32(0.7071067811865476)))


def _layernorm(h, g, b):
    mean = jnp.mean(h, axis=-1, keepdims=True)
    var = jnp.mean((h - mean) ** 2, axis=-1, keepdims=True)
    return (h - mean) * lax.rsqrt(var + EPS) * g + b


# ----------------------------------------------------------------------------
# Fused BERT encoder kernel: grid=(num_layers,), activation carried in VMEM
# ----------------------------------------------------------------------------
def _bert_encoder_kernel(x_ref, bias_ref, embg_ref, embb_ref,
                         wqkv_ref, bqkv_ref, wo_ref, bo_ref,
                         ln1g_ref, ln1b_ref,
                         wi_ref, bi_ref, wo2_ref, bo2_ref,
                         ln2g_ref, ln2b_ref,
                         o_ref, h_ref, ctx_ref,
                         *, batch, seq, num_heads):
    """One grid step == one BERT encoder layer.

    x:    [B*S, H] f32  summed embeddings (pre-LayerNorm)
    bias: [B, S]   f32  additive key mask (0 keep / -1e9 masked)
    wqkv: [H, 3H] bf16 (Q columns pre-scaled by 1/sqrt(Dh)); wo:[H,H],
          wi:[H,I], wo2:[I,H] bf16; biases / LN params f32 [1, *].
    h_ref:   [B*S, H] f32 VMEM scratch — activation carry across layers.
    ctx_ref: [B*S, H] f32 VMEM scratch — per-head attention context.
    """
    l = pl.program_id(0)
    H = x_ref.shape[-1]
    Dh = H // num_heads

    # Embedding LayerNorm, fused into the first layer step.
    @pl.when(l == 0)
    def _():
        h_ref[...] = _layernorm(x_ref[...], embg_ref[...], embb_ref[...])

    x = h_ref[...]                                               # [BS, H] f32
    xb = x.astype(jnp.bfloat16)

    # --- fused QKV projection (bf16 operands, f32 accumulation) ---
    qkv = jnp.dot(xb, wqkv_ref[...],
                  preferred_element_type=jnp.float32) + bqkv_ref[...]  # [BS,3H] f32
    q = qkv[:, 0 * H:1 * H].reshape(batch, seq, H)
    k = qkv[:, 1 * H:2 * H].reshape(batch, seq, H)
    v = qkv[:, 2 * H:3 * H].reshape(batch, seq, H)
    bias3 = bias_ref[...][:, None, :]                            # [B, 1, S]

    # --- attention: batch handled by a batched einsum, per-head context is
    #     written straight into the ctx scratch (no concatenate glue).
    # 1/sqrt(Dh) already folded into the Q weights.
    # TODO(synk): at real nh=12, move heads onto a grid axis / fori_loop.
    for h in range(num_heads):
        sl = slice(h * Dh, (h + 1) * Dh)
        qh = q[:, :, sl].astype(jnp.bfloat16)                    # [B, S, Dh]
        kh = k[:, :, sl].astype(jnp.bfloat16)
        vh = v[:, :, sl].astype(jnp.bfloat16)
        s = jnp.einsum('bqd,bkd->bqk', qh, kh,
                       preferred_element_type=jnp.float32)       # [B, S, S] f32
        s = s + bias3                                            # mask keys
        m = jnp.max(s, axis=-1, keepdims=True)
        p = jnp.exp(s - m)
        denom = jnp.sum(p, axis=-1, keepdims=True)
        p = p * pl.reciprocal(denom, approx=True)                # EUP slot
        ctx_h = jnp.einsum('bqk,bkd->bqd', p.astype(jnp.bfloat16), vh,
                           preferred_element_type=jnp.float32)   # [B, S, Dh]
        ctx_ref[:, sl] = ctx_h.reshape(batch * seq, Dh)

    # --- attention output projection + residual + LN ---
    ctx = ctx_ref[...].astype(jnp.bfloat16)                      # [BS, H]
    attn_out = jnp.dot(ctx, wo_ref[...],
                       preferred_element_type=jnp.float32) + bo_ref[...]
    h1 = _layernorm(attn_out + x, ln1g_ref[...], ln1b_ref[...])

    # --- feed-forward (GELU) + residual + LN ---
    inter = jnp.dot(h1.astype(jnp.bfloat16), wi_ref[...],
                    preferred_element_type=jnp.float32) + bi_ref[...]
    inter = _gelu(inter)
    ffn = jnp.dot(inter.astype(jnp.bfloat16), wo2_ref[...],
                  preferred_element_type=jnp.float32) + bo2_ref[...]
    out = _layernorm(ffn + h1, ln2g_ref[...], ln2b_ref[...])

    h_ref[...] = out                                             # carry to next layer
    o_ref[...] = out.astype(o_ref.dtype)


def _pooler_classifier_kernel(cls_ref, pw_ref, pb_ref, cw_ref, cb_ref, o_ref):
    """pooled = tanh(cls @ Wp + bp); logits = pooled @ Wc_padded + bc_padded.

    Output last dim padded to 128 lanes (lane-dense stores); sliced in wrapper.
    Dropout(0.3) between pooler and classifier is identity at inference.
    """
    pooled = jnp.tanh(jnp.dot(cls_ref[...].astype(jnp.bfloat16), pw_ref[...],
                              preferred_element_type=jnp.float32) + pb_ref[...])
    logits = jnp.dot(pooled.astype(jnp.bfloat16), cw_ref[...],
                     preferred_element_type=jnp.float32) + cb_ref[...]
    o_ref[...] = logits.astype(o_ref.dtype)


# ----------------------------------------------------------------------------
# pallas_call wrappers
# ----------------------------------------------------------------------------
def _const_spec(shape):
    """Full-array block, grid-invariant (block == full array: no (8,128) rule)."""
    zeros = (0,) * len(shape)
    return pl.BlockSpec(shape, lambda *_: zeros)


def _layer_spec(shape):
    """Stacked-per-layer array [L, *shape]: layer dim squeezed out in kernel."""
    zeros = (0,) * len(shape)
    return pl.BlockSpec((None,) + shape, lambda l: (l,) + zeros)


def bert_encoder(x, mask_bias, params, *, batch, seq, num_heads):
    BS, H = x.shape
    L = params["wqkv"].shape[0]
    I = params["wi"].shape[-1]

    kern = functools.partial(_bert_encoder_kernel, batch=batch, seq=seq,
                             num_heads=num_heads)
    in_specs = [
        _const_spec((BS, H)),        # x (embeddings)
        _const_spec((batch, seq)),   # mask bias
        _const_spec((1, H)),         # emb LN gamma
        _const_spec((1, H)),         # emb LN beta
        _layer_spec((H, 3 * H)),     # wqkv
        _layer_spec((1, 3 * H)),     # bqkv
        _layer_spec((H, H)),         # wo
        _layer_spec((1, H)),         # bo
        _layer_spec((1, H)),         # ln1 gamma
        _layer_spec((1, H)),         # ln1 beta
        _layer_spec((H, I)),         # wi
        _layer_spec((1, I)),         # bi
        _layer_spec((I, H)),         # wo2
        _layer_spec((1, H)),         # bo2
        _layer_spec((1, H)),         # ln2 gamma
        _layer_spec((1, H)),         # ln2 beta
    ]
    return pl.pallas_call(
        kern,
        out_shape=jax.ShapeDtypeStruct((BS, H), jnp.float32),
        grid=(L,),
        in_specs=in_specs,
        out_specs=_const_spec((BS, H)),
        scratch_shapes=[pltpu.VMEM((BS, H), jnp.float32),   # activation carry
                        pltpu.VMEM((BS, H), jnp.float32)],  # attention context
        compiler_params=pltpu.CompilerParams(
            dimension_semantics=("arbitrary",)),
    )(x, mask_bias,
      params["emb_ln_g"], params["emb_ln_b"],
      params["wqkv"], params["bqkv"], params["wo"], params["bo"],
      params["ln1_g"], params["ln1_b"],
      params["wi"], params["bi"], params["wo2"], params["bo2"],
      params["ln2_g"], params["ln2_b"])


def pooler_classifier(cls_tok, pw, pb, cw_pad, cb_pad):
    out = jax.ShapeDtypeStruct((cls_tok.shape[0], LOGIT_PAD), jnp.float32)
    args = (cls_tok, pw, pb, cw_pad, cb_pad)
    return pl.pallas_call(
        _pooler_classifier_kernel,
        out_shape=out,
        grid=(1,),
        in_specs=[_const_spec(a.shape) for a in args],
        out_specs=_const_spec(out.shape),
    )(*args)


# ----------------------------------------------------------------------------
# Deterministic parameter init (synthetic; shapes follow BERT-base topology)
# Weights stored bf16 [in, out]; biases / LN params f32; per-layer tensors
# stacked along a leading layer axis; attention scale folded into Q weights.
# ----------------------------------------------------------------------------
def init_params(key, *, vocab, max_pos, hidden, inter, num_layers, num_heads,
                num_labels):
    def nrm(k, shape):
        return jax.random.normal(k, shape, jnp.float32) * 0.02

    Dh = hidden // num_heads
    scale = 1.0 / (Dh ** 0.5)

    keys = iter(jax.random.split(key, 8 + num_layers * 8))
    p = {
        "word_emb": nrm(next(keys), (vocab, hidden)),
        "pos_emb": nrm(next(keys), (max_pos, hidden)),
        "type_emb": nrm(next(keys), (2, hidden)),
        "emb_ln_g": jnp.ones((1, hidden), jnp.float32),
        "emb_ln_b": jnp.zeros((1, hidden), jnp.float32),
        "pooler_w": nrm(next(keys), (hidden, hidden)).astype(jnp.bfloat16),
        "pooler_b": jnp.zeros((1, hidden), jnp.float32),
    }
    # classifier weights, pre-padded to LOGIT_PAD lanes (extra cols are zero)
    cls_w = nrm(next(keys), (hidden, num_labels))
    p["cls_w_pad"] = jnp.pad(cls_w, ((0, 0), (0, LOGIT_PAD - num_labels))
                             ).astype(jnp.bfloat16)
    p["cls_b_pad"] = jnp.zeros((1, LOGIT_PAD), jnp.float32)

    wqkv_l, bqkv_l, wo_l, bo_l = [], [], [], []
    ln1g_l, ln1b_l, wi_l, bi_l = [], [], [], []
    wo2_l, bo2_l, ln2g_l, ln2b_l = [], [], [], []
    for _ in range(num_layers):
        wq = nrm(next(keys), (hidden, hidden)) * scale    # fold 1/sqrt(Dh) into Q
        wk = nrm(next(keys), (hidden, hidden))
        wv = nrm(next(keys), (hidden, hidden))
        bq = jnp.zeros((1, hidden), jnp.float32) * scale  # (zeros; fold kept explicit)
        bkv = jnp.zeros((1, 2 * hidden), jnp.float32)
        wqkv_l.append(jnp.concatenate([wq, wk, wv], axis=1))
        bqkv_l.append(jnp.concatenate([bq, bkv], axis=1))
        wo_l.append(nrm(next(keys), (hidden, hidden)))
        bo_l.append(jnp.zeros((1, hidden), jnp.float32))
        ln1g_l.append(jnp.ones((1, hidden), jnp.float32))
        ln1b_l.append(jnp.zeros((1, hidden), jnp.float32))
        wi_l.append(nrm(next(keys), (hidden, inter)))
        bi_l.append(jnp.zeros((1, inter), jnp.float32))
        wo2_l.append(nrm(next(keys), (inter, hidden)))
        bo2_l.append(jnp.zeros((1, hidden), jnp.float32))
        ln2g_l.append(jnp.ones((1, hidden), jnp.float32))
        ln2b_l.append(jnp.zeros((1, hidden), jnp.float32))

    p.update({
        "wqkv": jnp.stack(wqkv_l).astype(jnp.bfloat16),   # [L, H, 3H]
        "bqkv": jnp.stack(bqkv_l),                        # [L, 1, 3H]
        "wo": jnp.stack(wo_l).astype(jnp.bfloat16),       # [L, H, H]
        "bo": jnp.stack(bo_l),
        "ln1_g": jnp.stack(ln1g_l),
        "ln1_b": jnp.stack(ln1b_l),
        "wi": jnp.stack(wi_l).astype(jnp.bfloat16),       # [L, H, I]
        "bi": jnp.stack(bi_l),
        "wo2": jnp.stack(wo2_l).astype(jnp.bfloat16),     # [L, I, H]
        "bo2": jnp.stack(bo2_l),
        "ln2_g": jnp.stack(ln2g_l),
        "ln2_b": jnp.stack(ln2b_l),
    })
    return p


# ----------------------------------------------------------------------------
# Forward pass (glue: embedding gathers + CLS slice; compute: 2 Pallas calls)
# ----------------------------------------------------------------------------
def indobert_classifier_forward(params, input_ids, attention_mask, *,
                                num_heads, num_labels):
    B, S = input_ids.shape
    H = params["word_emb"].shape[1]

    # --- embeddings (gathers are JAX glue; LayerNorm is fused into the kernel)
    pos_ids = jnp.arange(S, dtype=jnp.int32)[None, :]
    emb = (params["word_emb"][input_ids]
           + params["pos_emb"][pos_ids]
           + params["type_emb"][jnp.zeros_like(input_ids)])
    x = emb.reshape(B * S, H).astype(jnp.float32)

    # additive attention-mask bias, [B, S]: 0 for keep, -1e9 for masked keys
    mask_bias = (1.0 - attention_mask.astype(jnp.float32)) * -1e9

    # --- full encoder (embedding LN + all layers) in one fused pallas_call ---
    x = bert_encoder(x, mask_bias, params, batch=B, seq=S, num_heads=num_heads)

    # --- pooler (Linear+tanh on [CLS]) + dropout(identity) + classifier ---
    cls_tok = x.reshape(B, S, H)[:, 0, :]                        # [B, H]
    logits_pad = pooler_classifier(cls_tok, params["pooler_w"],
                                   params["pooler_b"],
                                   params["cls_w_pad"], params["cls_b_pad"])
    return logits_pad[:, :num_labels]


# ----------------------------------------------------------------------------
if __name__ == "__main__":
    VOCAB, MAX_POS = 100, 16
    HIDDEN, INTER, NUM_LAYERS, NUM_HEADS = 32, 64, 2, 4
    NUM_LABELS = 3
    B, S = 2, 8

    root = jax.random.PRNGKey(0)
    k_param, k_ids = jax.random.split(root)

    params = init_params(k_param, vocab=VOCAB, max_pos=MAX_POS, hidden=HIDDEN,
                         inter=INTER, num_layers=NUM_LAYERS,
                         num_heads=NUM_HEADS, num_labels=NUM_LABELS)

    input_ids = jax.random.randint(k_ids, (B, S), 0, VOCAB, dtype=jnp.int32)
    attention_mask = jnp.array(
        [[1, 1, 1, 1, 1, 1, 0, 0],
         [1, 1, 1, 1, 0, 0, 0, 0]], dtype=jnp.int32)

    logits = indobert_classifier_forward(params, input_ids, attention_mask,
                                         num_heads=NUM_HEADS,
                                         num_labels=NUM_LABELS)
    logits = jax.block_until_ready(logits)
    assert logits.shape == (B, NUM_LABELS)
    print("KERNEL_OK")
</pallas_src>

<mosaic_0001>
module attributes {stable_mosaic.version = 11 : i64} {
  func.func @_bert_encoder_kernel(%arg0: i32, %arg1: memref<16x32xf32, #tpu.memory_space<vmem>>, %arg2: memref<2x8xf32, #tpu.memory_space<vmem>>, %arg3: memref<1x32xf32, #tpu.memory_space<vmem>>, %arg4: memref<1x32xf32, #tpu.memory_space<vmem>>, %arg5: memref<1x32x96xbf16, #tpu.memory_space<vmem>>, %arg6: memref<1x1x96xf32, #tpu.memory_space<vmem>>, %arg7: memref<1x32x32xbf16, #tpu.memory_space<vmem>>, %arg8: memref<1x1x32xf32, #tpu.memory_space<vmem>>, %arg9: memref<1x1x32xf32, #tpu.memory_space<vmem>>, %arg10: memref<1x1x32xf32, #tpu.memory_space<vmem>>, %arg11: memref<1x32x64xbf16, #tpu.memory_space<vmem>>, %arg12: memref<1x1x64xf32, #tpu.memory_space<vmem>>, %arg13: memref<1x64x32xbf16, #tpu.memory_space<vmem>>, %arg14: memref<1x1x32xf32, #tpu.memory_space<vmem>>, %arg15: memref<1x1x32xf32, #tpu.memory_space<vmem>>, %arg16: memref<1x1x32xf32, #tpu.memory_space<vmem>>, %arg17: memref<16x32xf32, #tpu.memory_space<vmem>>, %arg18: memref<16x32xf32, #tpu.memory_space<vmem>>, %arg19: memref<16x32xf32, #tpu.memory_space<vmem>>) attributes {dimension_semantics = [#tpu.dimension_semantics<arbitrary>], iteration_bounds = array<i64: 2>, scalar_prefetch = 0 : i64, scratch_operands = 2 : i64, tpu.core_type = #tpu.core_type<tc>, window_params = [{pipeline_mode = #tpu.pipeline_mode<synchronous>, transform_indices = @transform_0, window_bounds = array<i64: 16, 32>}, {pipeline_mode = #tpu.pipeline_mode<synchronous>, transform_indices = @transform_1, window_bounds = array<i64: 2, 8>}, {pipeline_mode = #tpu.pipeline_mode<synchronous>, transform_indices = @transform_2, window_bounds = array<i64: 1, 32>}, {pipeline_mode = #tpu.pipeline_mode<synchronous>, transform_indices = @transform_3, window_bounds = array<i64: 1, 32>}, {transform_indices = @transform_4, window_bounds = array<i64: 1, 32, 96>}, {transform_indices = @transform_5, window_bounds = array<i64: 1, 1, 96>}, {transform_indices = @transform_6, window_bounds = array<i64: 1, 32, 32>}, {transform_indices = @transform_7, window_bounds = array<i64: 1, 1, 32>}, {transform_indices = @transform_8, window_bounds = array<i64: 1, 1, 32>}, {transform_indices = @transform_9, window_bounds = array<i64: 1, 1, 32>}, {transform_indices = @transform_10, window_bounds = array<i64: 1, 32, 64>}, {transform_indices = @transform_11, window_bounds = array<i64: 1, 1, 64>}, {transform_indices = @transform_12, window_bounds = array<i64: 1, 64, 32>}, {transform_indices = @transform_13, window_bounds = array<i64: 1, 1, 32>}, {transform_indices = @transform_14, window_bounds = array<i64: 1, 1, 32>}, {transform_indices = @transform_15, window_bounds = array<i64: 1, 1, 32>}, {pipeline_mode = #tpu.pipeline_mode<synchronous>, transform_indices = @transform_16, window_bounds = array<i64: 16, 32>}]} {
    %c0_i32 = arith.constant 0 : i32
    %0 = arith.cmpi eq, %arg0, %c0_i32 : i32
    %1 = arith.extui %0 : i1 to i32
    %c0_i32_0 = arith.constant 0 : i32
    %2 = arith.cmpi ne, %1, %c0_i32_0 : i32
    scf.if %2 {
      %c0_83 = arith.constant 0 : index
      %c0_84 = arith.constant 0 : index
      %201 = vector.load %arg1[%c0_83, %c0_84] : memref<16x32xf32, #tpu.memory_space<vmem>>, vector<16x32xf32>
      %c0_85 = arith.constant 0 : index
      %c0_86 = arith.constant 0 : index
      %202 = vector.load %arg3[%c0_85, %c0_86] : memref<1x32xf32, #tpu.memory_space<vmem>>, vector<1x32xf32>
      %c0_87 = arith.constant 0 : index
      %c0_88 = arith.constant 0 : index
      %203 = vector.load %arg4[%c0_87, %c0_88] : memref<1x32xf32, #tpu.memory_space<vmem>>, vector<1x32xf32>
      %cst_89 = arith.constant dense<0.000000e+00> : vector<16xf32>
      %204 = vector.multi_reduction <add>, %201, %cst_89 [1] : vector<16x32xf32> to vector<16xf32>
      %205 = vector.shape_cast %204 : vector<16xf32> to vector<16x1xf32>
      %cst_90 = arith.constant 3.200000e+01 : f32
      %206 = vector.broadcast %cst_90 : f32 to vector<16x1xf32>
      %207 = arith.divf %205, %206 : vector<16x1xf32>
      %208 = vector.broadcast %207 : vector<16x1xf32> to vector<16x32xf32>
      %209 = arith.subf %201, %208 : vector<16x32xf32>
      %210 = arith.mulf %209, %209 : vector<16x32xf32>
      %cst_91 = arith.constant dense<0.000000e+00> : vector<16xf32>
      %211 = vector.multi_reduction <add>, %210, %cst_91 [1] : vector<16x32xf32> to vector<16xf32>
      %212 = vector.shape_cast %211 : vector<16xf32> to vector<16x1xf32>
      %cst_92 = arith.constant 3.200000e+01 : f32
      %213 = vector.broadcast %cst_92 : f32 to vector<16x1xf32>
      %214 = arith.divf %212, %213 : vector<16x1xf32>
      %215 = vector.broadcast %207 : vector<16x1xf32> to vector<16x32xf32>
      %216 = arith.subf %201, %215 : vector<16x32xf32>
      %cst_93 = arith.constant 9.99999996E-13 : f32
      %217 = vector.broadcast %cst_93 : f32 to vector<16x1xf32>
      %218 = arith.addf %214, %217 : vector<16x1xf32>
      %219 = math.rsqrt %218 : vector<16x1xf32>
      %220 = vector.broadcast %219 : vector<16x1xf32> to vector<16x32xf32>
      %221 = arith.mulf %216, %220 : vector<16x32xf32>
      %222 = vector.broadcast %202 : vector<1x32xf32> to vector<16x32xf32>
      %223 = arith.mulf %221, %222 : vector<16x32xf32>
      %224 = vector.broadcast %203 : vector<1x32xf32> to vector<16x32xf32>
      %225 = arith.addf %223, %224 : vector<16x32xf32>
      %c0_94 = arith.constant 0 : index
      %c0_95 = arith.constant 0 : index
      %226 = vector.load %arg18[%c0_94, %c0_95] : memref<16x32xf32, #tpu.memory_space<vmem>>, vector<16x32xf32>
      tpu.vector_store %arg18[%c0_94, %c0_95], %225 {strides = array<i32>} : memref<16x32xf32, #tpu.memory_space<vmem>>, vector<16x32xf32>,
    } else {
    }
    %c0 = arith.constant 0 : index
    %c0_1 = arith.constant 0 : index
    %3 = vector.load %arg18[%c0, %c0_1] : memref<16x32xf32, #tpu.memory_space<vmem>>, vector<16x32xf32>
    %4 = arith.truncf %3 : vector<16x32xf32> to vector<16x32xbf16>
    %c0_2 = arith.constant 0 : index
    %c0_3 = arith.constant 0 : index
    %c0_4 = arith.constant 0 : index
    %5 = vector.load %arg5[%c0_2, %c0_3, %c0_4] : memref<1x32x96xbf16, #tpu.memory_space<vmem>>, vector<1x32x96xbf16>
    %6 = vector.shape_cast %5 : vector<1x32x96xbf16> to vector<32x96xbf16>
    %cst = arith.constant dense<0.000000e+00> : vector<16x96xf32>
    %7 = tpu.matmul %4, %6, %cst {dimension_numbers = #tpu.dot_dimension_numbers<[1], [0], [0], [1], [0, 0, 1, 1], [], []>} : vector<16x32xbf16>, vector<32x96xbf16>, vector<16x96xf32> -> vector<16x96xf32>
    %c0_5 = arith.constant 0 : index
    %c0_6 = arith.constant 0 : index
    %c0_7 = arith.constant 0 : index
    %8 = vector.load %arg6[%c0_5, %c0_6, %c0_7] : memref<1x1x96xf32, #tpu.memory_space<vmem>>, vector<1x1x96xf32>
    %9 = vector.shape_cast %8 : vector<1x1x96xf32> to vector<1x96xf32>
    %10 = vector.broadcast %9 : vector<1x96xf32> to vector<16x96xf32>
    %11 = arith.addf %7, %10 : vector<16x96xf32>
    %12 = vector.extract_strided_slice %11 {offsets = [0, 0], sizes = [16, 32], strides = [1, 1]} : vector<16x96xf32> to vector<16x32xf32>
    %13 = vector.shape_cast %12 : vector<16x32xf32> to vector<2x8x32xf32>
    %14 = vector.extract_strided_slice %11 {offsets = [0, 32], sizes = [16, 32], strides = [1, 1]} : vector<16x96xf32> to vector<16x32xf32>
    %15 = vector.shape_cast %14 : vector<16x32xf32> to vector<2x8x32xf32>
    %16 = vector.extract_strided_slice %11 {offsets = [0, 64], sizes = [16, 32], strides = [1, 1]} : vector<16x96xf32> to vector<16x32xf32>
    %17 = vector.shape_cast %16 : vector<16x32xf32> to vector<2x8x32xf32>
    %c0_8 = arith.constant 0 : index
    %c0_9 = arith.constant 0 : index
    %18 = vector.load %arg2[%c0_8, %c0_9] : memref<2x8xf32, #tpu.memory_space<vmem>>, vector<2x8xf32>
    %19 = vector.shape_cast %18 : vector<2x8xf32> to vector<2x1x8xf32>
    %20 = vector.extract_strided_slice %13 {offsets = [0, 0, 0], sizes = [2, 8, 8], strides = [1, 1, 1]} : vector<2x8x32xf32> to vector<2x8x8xf32>
    %21 = arith.truncf %20 : vector<2x8x8xf32> to vector<2x8x8xbf16>
    %22 = vector.extract_strided_slice %15 {offsets = [0, 0, 0], sizes = [2, 8, 8], strides = [1, 1, 1]} : vector<2x8x32xf32> to vector<2x8x8xf32>
    %23 = arith.truncf %22 : vector<2x8x8xf32> to vector<2x8x8xbf16>
    %24 = vector.extract_strided_slice %17 {offsets = [0, 0, 0], sizes = [2, 8, 8], strides = [1, 1, 1]} : vector<2x8x32xf32> to vector<2x8x8xf32>
    %25 = arith.truncf %24 : vector<2x8x8xf32> to vector<2x8x8xbf16>
    "tpu.trace_start"() <{level = 10 : i32, message = "bqd,bkd->bqk"}> : () -> ()
    %cst_10 = arith.constant dense<0.000000e+00> : vector<2x8x8xf32>
    %26 = tpu.matmul %21, %23, %cst_10 {dimension_numbers = #tpu.dot_dimension_numbers<[2], [2], [1], [1], [0, 0, 0, 1, 1, 1], [0], [0]>} : vector<2x8x8xbf16>, vector<2x8x8xbf16>, vector<2x8x8xf32> -> vector<2x8x8xf32>
    "tpu.trace_stop"() : () -> ()
    %27 = vector.broadcast %19 : vector<2x1x8xf32> to vector<2x8x8xf32>
    %28 = arith.addf %26, %27 : vector<2x8x8xf32>
    %cst_11 = arith.constant dense<0xFF800000> : vector<2x8xf32>
    %29 = vector.multi_reduction <maximumf>, %28, %cst_11 [2] : vector<2x8x8xf32> to vector<2x8xf32>
    %30 = vector.shape_cast %29 : vector<2x8xf32> to vector<2x8x1xf32>
    %31 = vector.broadcast %30 : vector<2x8x1xf32> to vector<2x8x8xf32>
    %32 = arith.subf %28, %31 : vector<2x8x8xf32>
    %33 = math.exp %32 : vector<2x8x8xf32>
    %cst_12 = arith.constant dense<0.000000e+00> : vector<2x8xf32>
    %34 = vector.multi_reduction <add>, %33, %cst_12 [2] : vector<2x8x8xf32> to vector<2x8xf32>
    %35 = vector.shape_cast %34 : vector<2x8xf32> to vector<2x8x1xf32>
    %36 = tpu.reciprocal %35 {approx = true} : vector<2x8x1xf32> -> vector<2x8x1xf32>
    %37 = vector.broadcast %36 : vector<2x8x1xf32> to vector<2x8x8xf32>
    %38 = arith.mulf %33, %37 : vector<2x8x8xf32>
    %39 = arith.truncf %38 : vector<2x8x8xf32> to vector<2x8x8xbf16>
    "tpu.trace_start"() <{level = 10 : i32, message = "bqk,bkd->bqd"}> : () -> ()
    %cst_13 = arith.constant dense<0.000000e+00> : vector<2x8x8xf32>
    %40 = tpu.matmul %39, %25, %cst_13 {dimension_numbers = #tpu.dot_dimension_numbers<[2], [1], [1], [2], [0, 0, 0, 1, 1, 2], [0], [0]>} : vector<2x8x8xbf16>, vector<2x8x8xbf16>, vector<2x8x8xf32> -> vector<2x8x8xf32>
    "tpu.trace_stop"() : () -> ()
    %41 = vector.shape_cast %40 : vector<2x8x8xf32> to vector<16x8xf32>
    %c0_14 = arith.constant 0 : index
    %c0_15 = arith.constant 0 : index
    %42 = vector.load %arg19[%c0_14, %c0_15] : memref<16x32xf32, #tpu.memory_space<vmem>>, vector<16x8xf32>
    tpu.vector_store %arg19[%c0_14, %c0_15], %41 {strides = array<i32>} : memref<16x32xf32, #tpu.memory_space<vmem>>, vector<16x8xf32>,
    %43 = vector.extract_strided_slice %13 {offsets = [0, 0, 8], sizes = [2, 8, 8], strides = [1, 1, 1]} : vector<2x8x32xf32> to vector<2x8x8xf32>
    %44 = arith.truncf %43 : vector<2x8x8xf32> to vector<2x8x8xbf16>
    %45 = vector.extract_strided_slice %15 {offsets = [0, 0, 8], sizes = [2, 8, 8], strides = [1, 1, 1]} : vector<2x8x32xf32> to vector<2x8x8xf32>
    %46 = arith.truncf %45 : vector<2x8x8xf32> to vector<2x8x8xbf16>
    %47 = vector.extract_strided_slice %17 {offsets = [0, 0, 8], sizes = [2, 8, 8], strides = [1, 1, 1]} : vector<2x8x32xf32> to vector<2x8x8xf32>
    %48 = arith.truncf %47 : vector<2x8x8xf32> to vector<2x8x8xbf16>
    "tpu.trace_start"() <{level = 10 : i32, message = "bqd,bkd->bqk"}> : () -> ()
    %cst_16 = arith.constant dense<0.000000e+00> : vector<2x8x8xf32>
    %49 = tpu.matmul %44, %46, %cst_16 {dimension_numbers = #tpu.dot_dimension_numbers<[2], [2], [1], [1], [0, 0, 0, 1, 1, 1], [0], [0]>} : vector<2x8x8xbf16>, vector<2x8x8xbf16>, vector<2x8x8xf32> -> vector<2x8x8xf32>
    "tpu.trace_stop"() : () -> ()
    %50 = vector.broadcast %19 : vector<2x1x8xf32> to vector<2x8x8xf32>
    %51 = arith.addf %49, %50 : vector<2x8x8xf32>
    %cst_17 = arith.constant dense<0xFF800000> : vector<2x8xf32>
    %52 = vector.multi_reduction <maximumf>, %51, %cst_17 [2] : vector<2x8x8xf32> to vector<2x8xf32>
    %53 = vector.shape_cast %52 : vector<2x8xf32> to vector<2x8x1xf32>
    %54 = vector.broadcast %53 : vector<2x8x1xf32> to vector<2x8x8xf32>
    %55 = arith.subf %51, %54 : vector<2x8x8xf32>
    %56 = math.exp %55 : vector<2x8x8xf32>
    %cst_18 = arith.constant dense<0.000000e+00> : vector<2x8xf32>
    %57 = vector.multi_reduction <add>, %56, %cst_18 [2] : vector<2x8x8xf32> to vector<2x8xf32>
    %58 = vector.shape_cast %57 : vector<2x8xf32> to vector<2x8x1xf32>
    %59 = tpu.reciprocal %58 {approx = true} : vector<2x8x1xf32> -> vector<2x8x1xf32>
    %60 = vector.broadcast %59 : vector<2x8x1xf32> to vector<2x8x8xf32>
    %61 = arith.mulf %56, %60 : vector<2x8x8xf32>
    %62 = arith.truncf %61 : vector<2x8x8xf32> to vector<2x8x8xbf16>
    "tpu.trace_start"() <{level = 10 : i32, message = "bqk,bkd->bqd"}> : () -> ()
    %cst_19 = arith.constant dense<0.000000e+00> : vector<2x8x8xf32>
    %63 = tpu.matmul %62, %48, %cst_19 {dimension_numbers = #tpu.dot_dimension_numbers<[2], [1], [1], [2], [0, 0, 0, 1, 1, 2], [0], [0]>} : vector<2x8x8xbf16>, vector<2x8x8xbf16>, vector<2x8x8xf32> -> vector<2x8x8xf32>
    "tpu.trace_stop"() : () -> ()
    %64 = vector.shape_cast %63 : vector<2x8x8xf32> to vector<16x8xf32>
    %c0_20 = arith.constant 0 : index
    %c8 = arith.constant 8 : index
    %65 = vector.load %arg19[%c0_20, %c8] : memref<16x32xf32, #tpu.memory_space<vmem>>, vector<16x8xf32>
    tpu.vector_store %arg19[%c0_20, %c8], %64 {strides = array<i32>} : memref<16x32xf32, #tpu.memory_space<vmem>>, vector<16x8xf32>,
    %66 = vector.extract_strided_slice %13 {offsets = [0, 0, 16], sizes = [2, 8, 8], strides = [1, 1, 1]} : vector<2x8x32xf32> to vector<2x8x8xf32>
    %67 = arith.truncf %66 : vector<2x8x8xf32> to vector<2x8x8xbf16>
    %68 = vector.extract_strided_slice %15 {offsets = [0, 0, 16], sizes = [2, 8, 8], strides = [1, 1, 1]} : vector<2x8x32xf32> to vector<2x8x8xf32>
    %69 = arith.truncf %68 : vector<2x8x8xf32> to vector<2x8x8xbf16>
    %70 = vector.extract_strided_slice %17 {offsets = [0, 0, 16], sizes = [2, 8, 8], strides = [1, 1, 1]} : vector<2x8x32xf32> to vector<2x8x8xf32>
    %71 = arith.truncf %70 : vector<2x8x8xf32> to vector<2x8x8xbf16>
    "tpu.trace_start"() <{level = 10 : i32, message = "bqd,bkd->bqk"}> : () -> ()
    %cst_21 = arith.constant dense<0.000000e+00> : vector<2x8x8xf32>
    %72 = tpu.matmul %67, %69, %cst_21 {dimension_numbers = #tpu.dot_dimension_numbers<[2], [2], [1], [1], [0, 0, 0, 1, 1, 1], [0], [0]>} : vector<2x8x8xbf16>, vector<2x8x8xbf16>, vector<2x8x8xf32> -> vector<2x8x8xf32>
    "tpu.trace_stop"() : () -> ()
    %73 = vector.broadcast %19 : vector<2x1x8xf32> to vector<2x8x8xf32>
    %74 = arith.addf %72, %73 : vector<2x8x8xf32>
    %cst_22 = arith.constant dense<0xFF800000> : vector<2x8xf32>
    %75 = vector.multi_reduction <maximumf>, %74, %cst_22 [2] : vector<2x8x8xf32> to vector<2x8xf32>
    %76 = vector.shape_cast %75 : vector<2x8xf32> to vector<2x8x1xf32>
    %77 = vector.broadcast %76 : vector<2x8x1xf32> to vector<2x8x8xf32>
    %78 = arith.subf %74, %77 : vector<2x8x8xf32>
    %79 = math.exp %78 : vector<2x8x8xf32>
    %cst_23 = arith.constant dense<0.000000e+00> : vector<2x8xf32>
    %80 = vector.multi_reduction <add>, %79, %cst_23 [2] : vector<2x8x8xf32> to vector<2x8xf32>
    %81 = vector.shape_cast %80 : vector<2x8xf32> to vector<2x8x1xf32>
    %82 = tpu.reciprocal %81 {approx = true} : vector<2x8x1xf32> -> vector<2x8x1xf32>
    %83 = vector.broadcast %82 : vector<2x8x1xf32> to vector<2x8x8xf32>
    %84 = arith.mulf %79, %83 : vector<2x8x8xf32>
    %85 = arith.truncf %84 : vector<2x8x8xf32> to vector<2x8x8xbf16>
    "tpu.trace_start"() <{level = 10 : i32, message = "bqk,bkd->bqd"}> : () -> ()
    %cst_24 = arith.constant dense<0.000000e+00> : vector<2x8x8xf32>
    %86 = tpu.matmul %85, %71, %cst_24 {dimension_numbers = #tpu.dot_dimension_numbers<[2], [1], [1], [2], [0, 0, 0, 1, 1, 2], [0], [0]>} : vector<2x8x8xbf16>, vector<2x8x8xbf16>, vector<2x8x8xf32> -> vector<2x8x8xf32>
    "tpu.trace_stop"() : () -> ()
    %87 = vector.shape_cast %86 : vector<2x8x8xf32> to vector<16x8xf32>
    %c0_25 = arith.constant 0 : index
    %c16 = arith.constant 16 : index
    %88 = vector.load %arg19[%c0_25, %c16] : memref<16x32xf32, #tpu.memory_space<vmem>>, vector<16x8xf32>
    tpu.vector_store %arg19[%c0_25, %c16], %87 {strides = array<i32>} : memref<16x32xf32, #tpu.memory_space<vmem>>, vector<16x8xf32>,
    %89 = vector.extract_strided_slice %13 {offsets = [0, 0, 24], sizes = [2, 8, 8], strides = [1, 1, 1]} : vector<2x8x32xf32> to vector<2x8x8xf32>
    %90 = arith.truncf %89 : vector<2x8x8xf32> to vector<2x8x8xbf16>
    %91 = vector.extract_strided_slice %15 {offsets = [0, 0, 24], sizes = [2, 8, 8], strides = [1, 1, 1]} : vector<2x8x32xf32> to vector<2x8x8xf32>
    %92 = arith.truncf %91 : vector<2x8x8xf32> to vector<2x8x8xbf16>
    %93 = vector.extract_strided_slice %17 {offsets = [0, 0, 24], sizes = [2, 8, 8], strides = [1, 1, 1]} : vector<2x8x32xf32> to vector<2x8x8xf32>
    %94 = arith.truncf %93 : vector<2x8x8xf32> to vector<2x8x8xbf16>
    "tpu.trace_start"() <{level = 10 : i32, message = "bqd,bkd->bqk"}> : () -> ()
    %cst_26 = arith.constant dense<0.000000e+00> : vector<2x8x8xf32>
    %95 = tpu.matmul %90, %92, %cst_26 {dimension_numbers = #tpu.dot_dimension_numbers<[2], [2], [1], [1], [0, 0, 0, 1, 1, 1], [0], [0]>} : vector<2x8x8xbf16>, vector<2x8x8xbf16>, vector<2x8x8xf32> -> vector<2x8x8xf32>
    "tpu.trace_stop"() : () -> ()
    %96 = vector.broadcast %19 : vector<2x1x8xf32> to vector<2x8x8xf32>
    %97 = arith.addf %95, %96 : vector<2x8x8xf32>
    %cst_27 = arith.constant dense<0xFF800000> : vector<2x8xf32>
    %98 = vector.multi_reduction <maximumf>, %97, %cst_27 [2] : vector<2x8x8xf32> to vector<2x8xf32>
    %99 = vector.shape_cast %98 : vector<2x8xf32> to vector<2x8x1xf32>
    %100 = vector.broadcast %99 : vector<2x8x1xf32> to vector<2x8x8xf32>
    %101 = arith.subf %97, %100 : vector<2x8x8xf32>
    %102 = math.exp %101 : vector<2x8x8xf32>
    %cst_28 = arith.constant dense<0.000000e+00> : vector<2x8xf32>
    %103 = vector.multi_reduction <add>, %102, %cst_28 [2] : vector<2x8x8xf32> to vector<2x8xf32>
    %104 = vector.shape_cast %103 : vector<2x8xf32> to vector<2x8x1xf32>
    %105 = tpu.reciprocal %104 {approx = true} : vector<2x8x1xf32> -> vector<2x8x1xf32>
    %106 = vector.broadcast %105 : vector<2x8x1xf32> to vector<2x8x8xf32>
    %107 = arith.mulf %102, %106 : vector<2x8x8xf32>
    %108 = arith.truncf %107 : vector<2x8x8xf32> to vector<2x8x8xbf16>
    "tpu.trace_start"() <{level = 10 : i32, message = "bqk,bkd->bqd"}> : () -> ()
    %cst_29 = arith.constant dense<0.000000e+00> : vector<2x8x8xf32>
    %109 = tpu.matmul %108, %94, %cst_29 {dimension_numbers = #tpu.dot_dimension_numbers<[2], [1], [1], [2], [0, 0, 0, 1, 1, 2], [0], [0]>} : vector<2x8x8xbf16>, vector<2x8x8xbf16>, vector<2x8x8xf32> -> vector<2x8x8xf32>
    "tpu.trace_stop"() : () -> ()
    %110 = vector.shape_cast %109 : vector<2x8x8xf32> to vector<16x8xf32>
    %c0_30 = arith.constant 0 : index
    %c24 = arith.constant 24 : index
    %111 = vector.load %arg19[%c0_30, %c24] : memref<16x32xf32, #tpu.memory_space<vmem>>, vector<16x8xf32>
    tpu.vector_store %arg19[%c0_30, %c24], %110 {strides = array<i32>} : memref<16x32xf32, #tpu.memory_space<vmem>>, vector<16x8xf32>,
    %c0_31 = arith.constant 0 : index
    %c0_32 = arith.constant 0 : index
    %112 = vector.load %arg19[%c0_31, %c0_32] : memref<16x32xf32, #tpu.memory_space<vmem>>, vector<16x32xf32>
    %113 = arith.truncf %112 : vector<16x32xf32> to vector<16x32xbf16>
    %c0_33 = arith.constant 0 : index
    %c0_34 = arith.constant 0 : index
    %c0_35 = arith.constant 0 : index
    %114 = vector.load %arg7[%c0_33, %c0_34, %c0_35] : memref<1x32x32xbf16, #tpu.memory_space<vmem>>, vector<1x32x32xbf16>
    %115 = vector.shape_cast %114 : vector<1x32x32xbf16> to vector<32x32xbf16>
    %cst_36 = arith.constant dense<0.000000e+00> : vector<16x32xf32>
    %116 = tpu.matmul %113, %115, %cst_36 {dimension_numbers = #tpu.dot_dimension_numbers<[1], [0], [0], [1], [0, 0, 1, 1], [], []>} : vector<16x32xbf16>, vector<32x32xbf16>, vector<16x32xf32> -> vector<16x32xf32>
    %c0_37 = arith.constant 0 : index
    %c0_38 = arith.constant 0 : index
    %c0_39 = arith.constant 0 : index
    %117 = vector.load %arg8[%c0_37, %c0_38, %c0_39] : memref<1x1x32xf32, #tpu.memory_space<vmem>>, vector<1x1x32xf32>
    %118 = vector.shape_cast %117 : vector<1x1x32xf32> to vector<1x32xf32>
    %119 = vector.broadcast %118 : vector<1x32xf32> to vector<16x32xf32>
    %120 = arith.addf %116, %119 : vector<16x32xf32>
    %121 = arith.addf %120, %3 : vector<16x32xf32>
    %c0_40 = arith.constant 0 : index
    %c0_41 = arith.constant 0 : index
    %c0_42 = arith.constant 0 : index
    %122 = vector.load %arg9[%c0_40, %c0_41, %c0_42] : memref<1x1x32xf32, #tpu.memory_space<vmem>>, vector<1x1x32xf32>
    %123 = vector.shape_cast %122 : vector<1x1x32xf32> to vector<1x32xf32>
    %c0_43 = arith.constant 0 : index
    %c0_44 = arith.constant 0 : index
    %c0_45 = arith.constant 0 : index
    %124 = vector.load %arg10[%c0_43, %c0_44, %c0_45] : memref<1x1x32xf32, #tpu.memory_space<vmem>>, vector<1x1x32xf32>
    %125 = vector.shape_cast %124 : vector<1x1x32xf32> to vector<1x32xf32>
    %cst_46 = arith.constant dense<0.000000e+00> : vector<16xf32>
    %126 = vector.multi_reduction <add>, %121, %cst_46 [1] : vector<16x32xf32> to vector<16xf32>
    %127 = vector.shape_cast %126 : vector<16xf32> to vector<16x1xf32>
    %cst_47 = arith.constant 3.200000e+01 : f32
    %128 = vector.broadcast %cst_47 : f32 to vector<16x1xf32>
    %129 = arith.divf %127, %128 : vector<16x1xf32>
    %130 = vector.broadcast %129 : vector<16x1xf32> to vector<16x32xf32>
    %131 = arith.subf %121, %130 : vector<16x32xf32>
    %132 = arith.mulf %131, %131 : vector<16x32xf32>
    %cst_48 = arith.constant dense<0.000000e+00> : vector<16xf32>
    %133 = vector.multi_reduction <add>, %132, %cst_48 [1] : vector<16x32xf32> to vector<16xf32>
    %134 = vector.shape_cast %133 : vector<16xf32> to vector<16x1xf32>
    %cst_49 = arith.constant 3.200000e+01 : f32
    %135 = vector.broadcast %cst_49 : f32 to vector<16x1xf32>
    %136 = arith.divf %134, %135 : vector<16x1xf32>
    %137 = vector.broadcast %129 : vector<16x1xf32> to vector<16x32xf32>
    %138 = arith.subf %121, %137 : vector<16x32xf32>
    %cst_50 = arith.constant 9.99999996E-13 : f32
    %139 = vector.broadcast %cst_50 : f32 to vector<16x1xf32>
    %140 = arith.addf %136, %139 : vector<16x1xf32>
    %141 = math.rsqrt %140 : vector<16x1xf32>
    %142 = vector.broadcast %141 : vector<16x1xf32> to vector<16x32xf32>
    %143 = arith.mulf %138, %142 : vector<16x32xf32>
    %144 = vector.broadcast %123 : vector<1x32xf32> to vector<16x32xf32>
    %145 = arith.mulf %143, %144 : vector<16x32xf32>
    %146 = vector.broadcast %125 : vector<1x32xf32> to vector<16x32xf32>
    %147 = arith.addf %145, %146 : vector<16x32xf32>
    %148 = arith.truncf %147 : vector<16x32xf32> to vector<16x32xbf16>
    %c0_51 = arith.constant 0 : index
    %c0_52 = arith.constant 0 : index
    %c0_53 = arith.constant 0 : index
    %149 = vector.load %arg11[%c0_51, %c0_52, %c0_53] : memref<1x32x64xbf16, #tpu.memory_space<vmem>>, vector<1x32x64xbf16>
    %150 = vector.shape_cast %149 : vector<1x32x64xbf16> to vector<32x64xbf16>
    %cst_54 = arith.constant dense<0.000000e+00> : vector<16x64xf32>
    %151 = tpu.matmul %148, %150, %cst_54 {dimension_numbers = #tpu.dot_dimension_numbers<[1], [0], [0], [1], [0, 0, 1, 1], [], []>} : vector<16x32xbf16>, vector<32x64xbf16>, vector<16x64xf32> -> vector<16x64xf32>
    %c0_55 = arith.constant 0 : index
    %c0_56 = arith.constant 0 : index
    %c0_57 = arith.constant 0 : index
    %152 = vector.load %arg12[%c0_55, %c0_56, %c0_57] : memref<1x1x64xf32, #tpu.memory_space<vmem>>, vector<1x1x64xf32>
    %153 = vector.shape_cast %152 : vector<1x1x64xf32> to vector<1x64xf32>
    %154 = vector.broadcast %153 : vector<1x64xf32> to vector<16x64xf32>
    %155 = arith.addf %151, %154 : vector<16x64xf32>
    %cst_58 = arith.constant 5.000000e-01 : f32
    %156 = vector.broadcast %cst_58 : f32 to vector<16x64xf32>
    %157 = arith.mulf %156, %155 : vector<16x64xf32>
    %cst_59 = arith.constant 0.707106769 : f32
    %158 = vector.broadcast %cst_59 : f32 to vector<16x64xf32>
    %159 = arith.mulf %155, %158 : vector<16x64xf32>
    %160 = math.erf %159 : vector<16x64xf32>
    %cst_60 = arith.constant 1.000000e+00 : f32
    %161 = vector.broadcast %cst_60 : f32 to vector<16x64xf32>
    %162 = arith.addf %161, %160 : vector<16x64xf32>
    %163 = arith.mulf %157, %162 : vector<16x64xf32>
    %164 = arith.truncf %163 : vector<16x64xf32> to vector<16x64xbf16>
    %c0_61 = arith.constant 0 : index
    %c0_62 = arith.constant 0 : index
    %c0_63 = arith.constant 0 : index
    %165 = vector.load %arg13[%c0_61, %c0_62, %c0_63] : memref<1x64x32xbf16, #tpu.memory_space<vmem>>, vector<1x64x32xbf16>
    %166 = vector.shape_cast %165 : vector<1x64x32xbf16> to vector<64x32xbf16>
    %cst_64 = arith.constant dense<0.000000e+00> : vector<16x32xf32>
    %167 = tpu.matmul %164, %166, %cst_64 {dimension_numbers = #tpu.dot_dimension_numbers<[1], [0], [0], [1], [0, 0, 1, 1], [], []>} : vector<16x64xbf16>, vector<64x32xbf16>, vector<16x32xf32> -> vector<16x32xf32>
    %c0_65 = arith.constant 0 : index
    %c0_66 = arith.constant 0 : index
    %c0_67 = arith.constant 0 : index
    %168 = vector.load %arg14[%c0_65, %c0_66, %c0_67] : memref<1x1x32xf32, #tpu.memory_space<vmem>>, vector<1x1x32xf32>
    %169 = vector.shape_cast %168 : vector<1x1x32xf32> to vector<1x32xf32>
    %170 = vector.broadcast %169 : vector<1x32xf32> to vector<16x32xf32>
    %171 = arith.addf %167, %170 : vector<16x32xf32>
    %172 = arith.addf %171, %147 : vector<16x32xf32>
    %c0_68 = arith.constant 0 : index
    %c0_69 = arith.constant 0 : index
    %c0_70 = arith.constant 0 : index
    %173 = vector.load %arg15[%c0_68, %c0_69, %c0_70] : memref<1x1x32xf32, #tpu.memory_space<vmem>>, vector<1x1x32xf32>
    %174 = vector.shape_cast %173 : vector<1x1x32xf32> to vector<1x32xf32>
    %c0_71 = arith.constant 0 : index
    %c0_72 = arith.constant 0 : index
    %c0_73 = arith.constant 0 : index
    %175 = vector.load %arg16[%c0_71, %c0_72, %c0_73] : memref<1x1x32xf32, #tpu.memory_space<vmem>>, vector<1x1x32xf32>
    %176 = vector.shape_cast %175 : vector<1x1x32xf32> to vector<1x32xf32>
    %cst_74 = arith.constant dense<0.000000e+00> : vector<16xf32>
    %177 = vector.multi_reduction <add>, %172, %cst_74 [1] : vector<16x32xf32> to vector<16xf32>
    %178 = vector.shape_cast %177 : vector<16xf32> to vector<16x1xf32>
    %cst_75 = arith.constant 3.200000e+01 : f32
    %179 = vector.broadcast %cst_75 : f32 to vector<16x1xf32>
    %180 = arith.divf %178, %179 : vector<16x1xf32>
    %181 = vector.broadcast %180 : vector<16x1xf32> to vector<16x32xf32>
    %182 = arith.subf %172, %181 : vector<16x32xf32>
    %183 = arith.mulf %182, %182 : vector<16x32xf32>
    %cst_76 = arith.constant dense<0.000000e+00> : vector<16xf32>
    %184 = vector.multi_reduction <add>, %183, %cst_76 [1] : vector<16x32xf32> to vector<16xf32>
    %185 = vector.shape_cast %184 : vector<16xf32> to vector<16x1xf32>
    %cst_77 = arith.constant 3.200000e+01 : f32
    %186 = vector.broadcast %cst_77 : f32 to vector<16x1xf32>
    %187 = arith.divf %185, %186 : vector<16x1xf32>
    %188 = vector.broadcast %180 : vector<16x1xf32> to vector<16x32xf32>
    %189 = arith.subf %172, %188 : vector<16x32xf32>
    %cst_78 = arith.constant 9.99999996E-13 : f32
    %190 = vector.broadcast %cst_78 : f32 to vector<16x1xf32>
    %191 = arith.addf %187, %190 : vector<16x1xf32>
    %192 = math.rsqrt %191 : vector<16x1xf32>
    %193 = vector.broadcast %192 : vector<16x1xf32> to vector<16x32xf32>
    %194 = arith.mulf %189, %193 : vector<16x32xf32>
    %195 = vector.broadcast %174 : vector<1x32xf32> to vector<16x32xf32>
    %196 = arith.mulf %194, %195 : vector<16x32xf32>
    %197 = vector.broadcast %176 : vector<1x32xf32> to vector<16x32xf32>
    %198 = arith.addf %196, %197 : vector<16x32xf32>
    %c0_79 = arith.constant 0 : index
    %c0_80 = arith.constant 0 : index
    %199 = vector.load %arg18[%c0_79, %c0_80] : memref<16x32xf32, #tpu.memory_space<vmem>>, vector<16x32xf32>
    tpu.vector_store %arg18[%c0_79, %c0_80], %198 {strides = array<i32>} : memref<16x32xf32, #tpu.memory_space<vmem>>, vector<16x32xf32>,
    %c0_81 = arith.constant 0 : index
    %c0_82 = arith.constant 0 : index
    %200 = vector.load %arg17[%c0_81, %c0_82] : memref<16x32xf32, #tpu.memory_space<vmem>>, vector<16x32xf32>
    tpu.vector_store %arg17[%c0_81, %c0_82], %198 {strides = array<i32>} : memref<16x32xf32, #tpu.memory_space<vmem>>, vector<16x32xf32>,
    return
  }
  func.func @transform_0(%arg0: i32) -> (i32, i32) {
    %c0_i32 = arith.constant 0 : i32
    %c0_i32_0 = arith.constant 0 : i32
    %c0_i32_1 = arith.constant 0 : i32
    return %c0_i32, %c0_i32_0 : i32, i32
  }
  func.func @transform_1(%arg0: i32) -> (i32, i32) {
    %c0_i32 = arith.constant 0 : i32
    %c0_i32_0 = arith.constant 0 : i32
    %c0_i32_1 = arith.constant 0 : i32
    return %c0_i32, %c0_i32_0 : i32, i32
  }
  func.func @transform_2(%arg0: i32) -> (i32, i32) {
    %c0_i32 = arith.constant 0 : i32
    %c0_i32_0 = arith.constant 0 : i32
    %c0_i32_1 = arith.constant 0 : i32
    return %c0_i32, %c0_i32_0 : i32, i32
  }
  func.func @transform_3(%arg0: i32) -> (i32, i32) {
    %c0_i32 = arith.constant 0 : i32
    %c0_i32_0 = arith.constant 0 : i32
    %c0_i32_1 = arith.constant 0 : i32
    return %c0_i32, %c0_i32_0 : i32, i32
  }
  func.func @transform_4(%arg0: i32) -> (i32, i32, i32) {
    %c0_i32 = arith.constant 0 : i32
    %c0_i32_0 = arith.constant 0 : i32
    %c0_i32_1 = arith.constant 0 : i32
    return %arg0, %c0_i32, %c0_i32_0 : i32, i32, i32
  }
  func.func @transform_5(%arg0: i32) -> (i32, i32, i32) {
    %c0_i32 = arith.constant 0 : i32
    %c0_i32_0 = arith.constant 0 : i32
    %c0_i32_1 = arith.constant 0 : i32
    return %arg0, %c0_i32, %c0_i32_0 : i32, i32, i32
  }
  func.func @transform_6(%arg0: i32) -> (i32, i32, i32) {
    %c0_i32 = arith.constant 0 : i32
    %c0_i32_0 = arith.constant 0 : i32
    %c0_i32_1 = arith.constant 0 : i32
    return %arg0, %c0_i32, %c0_i32_0 : i32, i32, i32
  }
  func.func @transform_7(%arg0: i32) -> (i32, i32, i32) {
    %c0_i32 = arith.constant 0 : i32
    %c0_i32_0 = arith.constant 0 : i32
    %c0_i32_1 = arith.constant 0 : i32
    return %arg0, %c0_i32, %c0_i32_0 : i32, i32, i32
  }
  func.func @transform_8(%arg0: i32) -> (i32, i32, i32) {
    %c0_i32 = arith.constant 0 : i32
    %c0_i32_0 = arith.constant 0 : i32
    %c0_i32_1 = arith.constant 0 : i32
    return %arg0, %c0_i32, %c0_i32_0 : i32, i32, i32
  }
  func.func @transform_9(%arg0: i32) -> (i32, i32, i32) {
    %c0_i32 = arith.constant 0 : i32
    %c0_i32_0 = arith.constant 0 : i32
    %c0_i32_1 = arith.constant 0 : i32
    return %arg0, %c0_i32, %c0_i32_0 : i32, i32, i32
  }
  func.func @transform_10(%arg0: i32) -> (i32, i32, i32) {
    %c0_i32 = arith.constant 0 : i32
    %c0_i32_0 = arith.constant 0 : i32
    %c0_i32_1 = arith.constant 0 : i32
    return %arg0, %c0_i32, %c0_i32_0 : i32, i32, i32
  }
  func.func @transform_11(%arg0: i32) -> (i32, i32, i32) {
    %c0_i32 = arith.constant 0 : i32
    %c0_i32_0 = arith.constant 0 : i32
    %c0_i32_1 = arith.constant 0 : i32
    return %arg0, %c0_i32, %c0_i32_0 : i32, i32, i32
  }
  func.func @transform_12(%arg0: i32) -> (i32, i32, i32) {
    %c0_i32 = arith.constant 0 : i32
    %c0_i32_0 = arith.constant 0 : i32
    %c0_i32_1 = arith.constant 0 : i32
    return %arg0, %c0_i32, %c0_i32_0 : i32, i32, i32
  }
  func.func @transform_13(%arg0: i32) -> (i32, i32, i32) {
    %c0_i32 = arith.constant 0 : i32
    %c0_i32_0 = arith.constant 0 : i32
    %c0_i32_1 = arith.constant 0 : i32
    return %arg0, %c0_i32, %c0_i32_0 : i32, i32, i32
  }
  func.func @transform_14(%arg0: i32) -> (i32, i32, i32) {
    %c0_i32 = arith.constant 0 : i32
    %c0_i32_0 = arith.constant 0 : i32
    %c0_i32_1 = arith.constant 0 : i32
    return %arg0, %c0_i32, %c0_i32_0 : i32, i32, i32
  }
  func.func @transform_15(%arg0: i32) -> (i32, i32, i32) {
    %c0_i32 = arith.constant 0 : i32
    %c0_i32_0 = arith.constant 0 : i32
    %c0_i32_1 = arith.constant 0 : i32
    return %arg0, %c0_i32, %c0_i32_0 : i32, i32, i32
  }
  func.func @transform_16(%arg0: i32) -> (i32, i32) {
    %c0_i32 = arith.constant 0 : i32
    %c0_i32_0 = arith.constant 0 : i32
    %c0_i32_1 = arith.constant 0 : i32
    return %c0_i32, %c0_i32_0 : i32, i32
  }
}

</mosaic_0001>

<llo_original>
// kernel: tpu_custom_call.1
$region0: #{tpu_custom_call.1}
  #allocation0 [shape = 'u32[]', space=smem, size = 0x4, offset = 0x4, fixed_abs, tag = 'smem constant byte address 0x4 - core index']
  #allocation1 [shape = 'u32[144,128]{1,0:T(1,128)}', space=vmem, size = 0x12000, scoped, tag = 'internal scratch']
  #allocation2 [shape = 'f32[16,32]{1,0:T(8,128)}', space=vmem, size = 0x2000, scoped, tag = 'scratch operand']
  #allocation3 [shape = 'f32[16,32]{1,0:T(8,128)}', space=vmem, size = 0x2000, scoped, tag = 'scratch operand']
  %s0 = inlined_call_operand.hbm [shape: f32[16,32], index: 0, kind: input, shape index: {}]
  %s1 = inlined_call_operand.vmem [shape: f32[2,8], index: 1, kind: input, shape index: {}]
  %s2 = inlined_call_operand.vmem [shape: f32[1,32], index: 2, kind: input, shape index: {}]
  %s3 = inlined_call_operand.hbm [shape: f32[1,32], index: 3, kind: input, shape index: {}]
  %s4 = inlined_call_operand.vmem [shape: bf16[2,32,96], index: 4, kind: input, shape index: {}]
  %s5 = inlined_call_operand.vmem [shape: f32[2,1,96], index: 5, kind: input, shape index: {}]
  %s6 = inlined_call_operand.vmem [shape: bf16[2,32,32], index: 6, kind: input, shape index: {}]
  %s7 = inlined_call_operand.vmem [shape: f32[2,1,32], index: 7, kind: input, shape index: {}]
  %s8 = inlined_call_operand.vmem [shape: f32[2,1,32], index: 8, kind: input, shape index: {}]
  %s9 = inlined_call_operand.vmem [shape: f32[2,1,32], index: 9, kind: input, shape index: {}]
  %s10 = inlined_call_operand.vmem [shape: bf16[2,32,64], index: 10, kind: input, shape index: {}]
  %s11 = inlined_call_operand.vmem [shape: f32[2,1,64], index: 11, kind: input, shape index: {}]
  %s12 = inlined_call_operand.vmem [shape: bf16[2,64,32], index: 12, kind: input, shape index: {}]
  %s13 = inlined_call_operand.vmem [shape: f32[2,1,32], index: 13, kind: input, shape index: {}]
  %s14 = inlined_call_operand.vmem [shape: f32[2,1,32], index: 14, kind: input, shape index: {}]
  %s15 = inlined_call_operand.vmem [shape: f32[2,1,32], index: 15, kind: input, shape index: {}]
  %s16 = inlined_call_operand.hbm [shape: f32[16,32], index: 16, kind: output, shape index: {}]
  %s17 = sld [smem:[#allocation0]]
  $region109: #{tpu_custom_call.1} parent=0
    _
  %s19 = ssub.s32 1, %s17
  %s20 = scalar_select 0, %s19, %s17
  $region1: #{tpu_custom_call.1} parent=0
    #allocation4 [shape = 'u8[8192]{0}', space=vmem, size = 0x2000, scoped, tag = 'input window, operand 0, single buffered']
    #allocation5 [shape = 's32[2]{0}', space=sflag, size = 0x8, scoped, tag = 'scoped memory for tpu_custom_call.1']
    #allocation6 [shape = 's32[2]{0}', space=sflag, size = 0x8, scoped, tag = 'scoped memory for tpu_custom_call.1']
    #allocation7 [shape = 'u8[512]{0}', space=vmem, size = 0x400, scoped, tag = 'input window, operand 3, single buffered']
    #allocation8 [shape = 's32[1]{0}', space=sflag, size = 0x4, scoped, tag = 'scoped memory for tpu_custom_call.1']
    #allocation9 [shape = 'u8[8192]{0}', space=vmem, size = 0x2000, scoped, tag = 'output window, operand 0, single buffered']
    %21 = vsyncpa [#allocation5], 0
    %22 = vsyncpa [#allocation8], 0
    %23 = vsyncpa [#allocation6], 0
    loop: start=0, step=1, limit=4
    $region2: #{tpu_custom_call.1} parent=1 // loop_pre_header
      _
    $region3: #{tpu_custom_call.1} parent=1 // loop_header
      %s25 = sphi 0, %s29
      %p26 = scmp.ge.s32.totalorder %s25, 4
      %s33 = sphi 0, %s33
      %s35 = sphi 0, %s33
      %s36 = sphi 0, %s35
      %s50 = sphi 0, %s36
      %s54 = sphi 0, %s54
      %s56 = sphi 0, %s54
      %s57 = sphi 0, %s56
      %s71 = sphi 0, %s57
      %s75 = sphi 0, %s75
      %s77 = sphi 0, %s75
      %s78 = sphi 0, %s77
      %s92 = sphi 0, %s78
      %s96 = sphi 0, %s96
      %s98 = sphi 0, %s96
      %s99 = sphi 0, %s98
      %s113 = sphi 0, %s99
      %s119 = sphi 0, %s121
      %s122 = sphi 0, %s119
      %s123 = sphi 0, %s122
      %s139 = sphi 0, %s123
      %s145 = sphi 0, %s147
      %s148 = sphi 0, %s145
      %s149 = sphi 0, %s148
      %s165 = sphi 0, %s149
      %s171 = sphi 0, %s173
      %s174 = sphi 0, %s171
      %s175 = sphi 0, %s174
      %s191 = sphi 0, %s175
      %s197 = sphi 0, %s199
      %s200 = sphi 0, %s197
      %s201 = sphi 0, %s200
      %s217 = sphi 0, %s201
      %s223 = sphi 0, %s225
      %s226 = sphi 0, %s223
      %s227 = sphi 0, %s226
      %s243 = sphi 0, %s227
      %s249 = sphi 0, %s251
      %s252 = sphi 0, %s249
      %s253 = sphi 0, %s252
      %s269 = sphi 0, %s253
      %s275 = sphi 0, %s277
      %s278 = sphi 0, %s275
      %s279 = sphi 0, %s278
      %s295 = sphi 0, %s279
      %s301 = sphi 0, %s303
      %s304 = sphi 0, %s301
      %s305 = sphi 0, %s304
      %s321 = sphi 0, %s305
      %s327 = sphi 0, %s329
      %s330 = sphi 0, %s327
      %s331 = sphi 0, %s330
      %s347 = sphi 0, %s331
      %s353 = sphi 0, %s355
      %s356 = sphi 0, %s353
      %s357 = sphi 0, %s356
      %s373 = sphi 0, %s357
      %s379 = sphi 0, %s381
      %s382 = sphi 0, %s379
      %s383 = sphi 0, %s382
      %s399 = sphi 0, %s383
      %s405 = sphi 0, %s407
      %s408 = sphi 0, %s405
      %s409 = sphi 0, %s408
      %s425 = sphi 0, %s409
      %s429 = sphi 0, %s429
      %s431 = sphi 0, %s429
      %s432 = sphi 0, %s431
      %s446 = sphi 0, %s432
    $region4: #{tpu_custom_call.1} parent=1 // loop_header_branch
      %28 = sbr.rel (%p26) target = $region8
    $region5: #{tpu_custom_call.1} parent=1 // loop_body
      %s30 = ssub.s32 %s25, 1
      %s31 = ssub.s32 %s25, 2
      %s32 = sadd.s32 %s25, 1
      %s34 = sadd.s32 %s33, 1
      %p37 = scmp.eq.s32.totalorder %s25, 1
      %p38 = scmp.ne.s32.totalorder %s33, %s35
      %p39 = scmp.eq.s32.totalorder %s25, 0
      %p40 = por %p38, %p39
      %p41 = scmp.ne.s32.totalorder %s33, %s35
      %p42 = scmp.eq.s32.totalorder %s30, 1
      %p43 = por %p41, %p42
      %p44 = scmp.ne.s32.totalorder %s35, %s36
      %p45 = scmp.eq.s32.totalorder %s30, 0
      %p46 = por %p44, %p45
      %p47 = scmp.ne.s32.totalorder %s35, %s36
      %p48 = scmp.eq.s32.totalorder %s31, 1
      %p49 = por %p47, %p48
      %p51 = scmp.ne.s32.totalorder %s36, %s50
      %p52 = scmp.eq.s32.totalorder %s31, 0
      %p53 = por %p51, %p52
      %s55 = sadd.s32 %s54, 1
      %p58 = scmp.eq.s32.totalorder %s25, 1
      %p59 = scmp.ne.s32.totalorder %s54, %s56
      %p60 = scmp.eq.s32.totalorder %s25, 0
      %p61 = por %p59, %p60
      %p62 = scmp.ne.s32.totalorder %s54, %s56
      %p63 = scmp.eq.s32.totalorder %s30, 1
      %p64 = por %p62, %p63
      %p65 = scmp.ne.s32.totalorder %s56, %s57
      %p66 = scmp.eq.s32.totalorder %s30, 0
      %p67 = por %p65, %p66
      %p68 = scmp.ne.s32.totalorder %s56, %s57
      %p69 = scmp.eq.s32.totalorder %s31, 1
      %p70 = por %p68, %p69
      %p72 = scmp.ne.s32.totalorder %s57, %s71
      %p73 = scmp.eq.s32.totalorder %s31, 0
      %p74 = por %p72, %p73
      %s76 = sadd.s32 %s75, 1
      %p79 = scmp.eq.s32.totalorder %s25, 1
      %p80 = scmp.ne.s32.totalorder %s75, %s77
      %p81 = scmp.eq.s32.totalorder %s25, 0
      %p82 = por %p80, %p81
      %p83 = scmp.ne.s32.totalorder %s75, %s77
      %p84 = scmp.eq.s32.totalorder %s30, 1
      %p85 = por %p83, %p84
      %p86 = scmp.ne.s32.totalorder %s77, %s78
      %p87 = scmp.eq.s32.totalorder %s30, 0
      %p88 = por %p86, %p87
      %p89 = scmp.ne.s32.totalorder %s77, %s78
      %p90 = scmp.eq.s32.totalorder %s31, 1
      %p91 = por %p89, %p90
      %p93 = scmp.ne.s32.totalorder %s78, %s92
      %p94 = scmp.eq.s32.totalorder %s31, 0
      %p95 = por %p93, %p94
      %s97 = sadd.s32 %s96, 1
      %p100 = scmp.eq.s32.totalorder %s25, 1
      %p101 = scmp.ne.s32.totalorder %s96, %s98
      %p102 = scmp.eq.s32.totalorder %s25, 0
      %p103 = por %p101, %p102
      %p104 = scmp.ne.s32.totalorder %s96, %s98
      %p105 = scmp.eq.s32.totalorder %s30, 1
      %p106 = por %p104, %p105
      %p107 = scmp.ne.s32.totalorder %s98, %s99
      %p108 = scmp.eq.s32.totalorder %s30, 0
      %p109 = por %p107, %p108
      %p110 = scmp.ne.s32.totalorder %s98, %s99
      %p111 = scmp.eq.s32.totalorder %s31, 1
      %p112 = por %p110, %p111
      %p114 = scmp.ne.s32.totalorder %s99, %s113
      %p115 = scmp.eq.s32.totalorder %s31, 0
      %p116 = por %p114, %p115
      %s117 = ssub.s32 %s25, %s32
      %p118 = scmp.eq.s32.totalorder %s117, 0
      %s120 = sadd.s32 %s119, 1
      %s121 = scalar_select %p118, %s119, %s120
      %p124 = pneg %p118
      %p125 = scmp.eq.s32.totalorder %s25, 1
      %p126 = por %p124, %p125
      %p127 = scmp.ne.s32.totalorder %s119, %s122
      %p128 = scmp.eq.s32.totalorder %s25, 0
      %p129 = por %p127, %p128
      %p130 = scmp.ne.s32.totalorder %s119, %s122
      %p131 = scmp.eq.s32.totalorder %s30, 1
      %p132 = por %p130, %p131
      %p133 = scmp.ne.s32.totalorder %s122, %s123
      %p134 = scmp.eq.s32.totalorder %s30, 0
      %p135 = por %p133, %p134
      %p136 = scmp.ne.s32.totalorder %s122, %s123
      %p137 = scmp.eq.s32.totalorder %s31, 1
      %p138 = por %p136, %p137
      %p140 = scmp.ne.s32.totalorder %s123, %s139
      %p141 = scmp.eq.s32.totalorder %s31, 0
      %p142 = por %p140, %p141
      %s143 = ssub.s32 %s25, %s32
      %p144 = scmp.eq.s32.totalorder %s143, 0
      %s146 = sadd.s32 %s145, 1
      %s147 = scalar_select %p144, %s145, %s146
      %p150 = pneg %p144
      %p151 = scmp.eq.s32.totalorder %s25, 1
      %p152 = por %p150, %p151
      %p153 = scmp.ne.s32.totalorder %s145, %s148
      %p154 = scmp.eq.s32.totalorder %s25, 0
      %p155 = por %p153, %p154
      %p156 = scmp.ne.s32.totalorder %s145, %s148
      %p157 = scmp.eq.s32.totalorder %s30, 1
      %p158 = por %p156, %p157
      %p159 = scmp.ne.s32.totalorder %s148, %s149
      %p160 = scmp.eq.s32.totalorder %s30, 0
      %p161 = por %p159, %p160
      %p162 = scmp.ne.s32.totalorder %s148, %s149
      %p163 = scmp.eq.s32.totalorder %s31, 1
      %p164 = por %p162, %p163
      %p166 = scmp.ne.s32.totalorder %s149, %s165
      %p167 = scmp.eq.s32.totalorder %s31, 0
      %p168 = por %p166, %p167
      %s169 = ssub.s32 %s25, %s32
      %p170 = scmp.eq.s32.totalorder %s169, 0
      %s172 = sadd.s32 %s171, 1
      %s173 = scalar_select %p170, %s171, %s172
      %p176 = pneg %p170
      %p177 = scmp.eq.s32.totalorder %s25, 1
      %p178 = por %p176, %p177
      %p179 = scmp.ne.s32.totalorder %s171, %s174
      %p180 = scmp.eq.s32.totalorder %s25, 0
      %p181 = por %p179, %p180
      %p182 = scmp.ne.s32.totalorder %s171, %s174
      %p183 = scmp.eq.s32.totalorder %s30, 1
      %p184 = por %p182, %p183
      %p185 = scmp.ne.s32.totalorder %s174, %s175
      %p186 = scmp.eq.s32.totalorder %s30, 0
      %p187 = por %p185, %p186
      %p188 = scmp.ne.s32.totalorder %s174, %s175
      %p189 = scmp.eq.s32.totalorder %s31, 1
      %p190 = por %p188, %p189
      %p192 = scmp.ne.s32.totalorder %s175, %s191
      %p193 = scmp.eq.s32.totalorder %s31, 0
      %p194 = por %p192, %p193
      %s195 = ssub.s32 %s25, %s32
      %p196 = scmp.eq.s32.totalorder %s195, 0
      %s198 = sadd.s32 %s197, 1
      %s199 = scalar_select %p196, %s197, %s198
      %p202 = pneg %p196
      %p203 = scmp.eq.s32.totalorder %s25, 1
      %p204 = por %p202, %p203
      %p205 = scmp.ne.s32.totalorder %s197, %s200
      %p206 = scmp.eq.s32.totalorder %s25, 0
      %p207 = por %p205, %p206
      %p208 = scmp.ne.s32.totalorder %s197, %s200
      %p209 = scmp.eq.s32.totalorder %s30, 1
      %p210 = por %p208, %p209
      %p211 = scmp.ne.s32.totalorder %s200, %s201
      %p212 = scmp.eq.s32.totalorder %s30, 0
      %p213 = por %p211, %p212
      %p214 = scmp.ne.s32.totalorder %s200, %s201
      %p215 = scmp.eq.s32.totalorder %s31, 1
      %p216 = por %p214, %p215
      %p218 = scmp.ne.s32.totalorder %s201, %s217
      %p219 = scmp.eq.s32.totalorder %s31, 0
      %p220 = por %p218, %p219
      %s221 = ssub.s32 %s25, %s32
      %p222 = scmp.eq.s32.totalorder %s221, 0
      %s224 = sadd.s32 %s223, 1
      %s225 = scalar_select %p222, %s223, %s224
      %p228 = pneg %p222
      %p229 = scmp.eq.s32.totalorder %s25, 1
      %p230 = por %p228, %p229
      %p231 = scmp.ne.s32.totalorder %s223, %s226
      %p232 = scmp.eq.s32.totalorder %s25, 0
      %p233 = por %p231, %p232
      %p234 = scmp.ne.s32.totalorder %s223, %s226
      %p235 = scmp.eq.s32.totalorder %s30, 1
      %p236 = por %p234, %p235
      %p237 = scmp.ne.s32.totalorder %s226, %s227
      %p238 = scmp.eq.s32.totalorder %s30, 0
      %p239 = por %p237, %p238
      %p240 = scmp.ne.s32.totalorder %s226, %s227
      %p241 = scmp.eq.s32.totalorder %s31, 1
      %p242 = por %p240, %p241
      %p244 = scmp.ne.s32.totalorder %s227, %s243
      %p245 = scmp.eq.s32.totalorder %s31, 0
      %p246 = por %p244, %p245
      %s247 = ssub.s32 %s25, %s32
      %p248 = scmp.eq.s32.totalorder %s247, 0
      %s250 = sadd.s32 %s249, 1
      %s251 = scalar_select %p248, %s249, %s250
      %p254 = pneg %p248
      %p255 = scmp.eq.s32.totalorder %s25, 1
      %p256 = por %p254, %p255
      %p257 = scmp.ne.s32.totalorder %s249, %s252
      %p258 = scmp.eq.s32.totalorder %s25, 0
      %p259 = por %p257, %p258
      %p260 = scmp.ne.s32.totalorder %s249, %s252
      %p261 = scmp.eq.s32.totalorder %s30, 1
      %p262 = por %p260, %p261
      %p263 = scmp.ne.s32.totalorder %s252, %s253
      %p264 = scmp.eq.s32.totalorder %s30, 0
      %p265 = por %p263, %p264
      %p266 = scmp.ne.s32.totalorder %s252, %s253
      %p267 = scmp.eq.s32.totalorder %s31, 1
      %p268 = por %p266, %p267
      %p270 = scmp.ne.s32.totalorder %s253, %s269
      %p271 = scmp.eq.s32.totalorder %s31, 0
      %p272 = por %p270, %p271
      %s273 = ssub.s32 %s25, %s32
      %p274 = scmp.eq.s32.totalorder %s273, 0
      %s276 = sadd.s32 %s275, 1
      %s277 = scalar_select %p274, %s275, %s276
      %p280 = pneg %p274
      %p281 = scmp.eq.s32.totalorder %s25, 1
      %p282 = por %p280, %p281
      %p283 = scmp.ne.s32.totalorder %s275, %s278
      %p284 = scmp.eq.s32.totalorder %s25, 0
      %p285 = por %p283, %p284
      %p286 = scmp.ne.s32.totalorder %s275, %s278
      %p287 = scmp.eq.s32.totalorder %s30, 1
      %p288 = por %p286, %p287
      %p289 = scmp.ne.s32.totalorder %s278, %s279
      %p290 = scmp.eq.s32.totalorder %s30, 0
      %p291 = por %p289, %p290
      %p292 = scmp.ne.s32.totalorder %s278, %s279
      %p293 = scmp.eq.s32.totalorder %s31, 1
      %p294 = por %p292, %p293
      %p296 = scmp.ne.s32.totalorder %s279, %s295
      %p297 = scmp.eq.s32.totalorder %s31, 0
      %p298 = por %p296, %p297
      %s299 = ssub.s32 %s25, %s32
      %p300 = scmp.eq.s32.totalorder %s299, 0
      %s302 = sadd.s32 %s301, 1
      %s303 = scalar_select %p300, %s301, %s302
      %p306 = pneg %p300
      %p307 = scmp.eq.s32.totalorder %s25, 1
      %p308 = por %p306, %p307
      %p309 = scmp.ne.s32.totalorder %s301, %s304
      %p310 = scmp.eq.s32.totalorder %s25, 0
      %p311 = por %p309, %p310
      %p312 = scmp.ne.s32.totalorder %s301, %s304
      %p313 = scmp.eq.s32.totalorder %s30, 1
      %p314 = por %p312, %p313
      %p315 = scmp.ne.s32.totalorder %s304, %s305
      %p316 = scmp.eq.s32.totalorder %s30, 0
      %p317 = por %p315, %p316
      %p318 = scmp.ne.s32.totalorder %s304, %s305
      %p319 = scmp.eq.s32.totalorder %s31, 1
      %p320 = por %p318, %p319
      %p322 = scmp.ne.s32.totalorder %s305, %s321
      %p323 = scmp.eq.s32.totalorder %s31, 0
      %p324 = por %p322, %p323
      %s325 = ssub.s32 %s25, %s32
      %p326 = scmp.eq.s32.totalorder %s325, 0
      %s328 = sadd.s32 %s327, 1
      %s329 = scalar_select %p326, %s327, %s328
      %p332 = pneg %p326
      %p333 = scmp.eq.s32.totalorder %s25, 1
      %p334 = por %p332, %p333
      %p335 = scmp.ne.s32.totalorder %s327, %s330
      %p336 = scmp.eq.s32.totalorder %s25, 0
      %p337 = por %p335, %p336
      %p338 = scmp.ne.s32.totalorder %s327, %s330
      %p339 = scmp.eq.s32.totalorder %s30, 1
      %p340 = por %p338, %p339
      %p341 = scmp.ne.s32.totalorder %s330, %s331
      %p342 = scmp.eq.s32.totalorder %s30, 0
      %p343 = por %p341, %p342
      %p344 = scmp.ne.s32.totalorder %s330, %s331
      %p345 = scmp.eq.s32.totalorder %s31, 1
      %p346 = por %p344, %p345
      %p348 = scmp.ne.s32.totalorder %s331, %s347
      %p349 = scmp.eq.s32.totalorder %s31, 0
      %p350 = por %p348, %p349
      %s351 = ssub.s32 %s25, %s32
      %p352 = scmp.eq.s32.totalorder %s351, 0
      %s354 = sadd.s32 %s353, 1
      %s355 = scalar_select %p352, %s353, %s354
      %p358 = pneg %p352
      %p359 = scmp.eq.s32.totalorder %s25, 1
      %p360 = por %p358, %p359
      %p361 = scmp.ne.s32.totalorder %s353, %s356
      %p362 = scmp.eq.s32.totalorder %s25, 0
      %p363 = por %p361, %p362
      %p364 = scmp.ne.s32.totalorder %s353, %s356
      %p365 = scmp.eq.s32.totalorder %s30, 1
      %p366 = por %p364, %p365
      %p367 = scmp.ne.s32.totalorder %s356, %s357
      %p368 = scmp.eq.s32.totalorder %s30, 0
      %p369 = por %p367, %p368
      %p370 = scmp.ne.s32.totalorder %s356, %s357
      %p371 = scmp.eq.s32.totalorder %s31, 1
      %p372 = por %p370, %p371
      %p374 = scmp.ne.s32.totalorder %s357, %s373
      %p375 = scmp.eq.s32.totalorder %s31, 0
      %p376 = por %p374, %p375
      %s377 = ssub.s32 %s25, %s32
      %p378 = scmp.eq.s32.totalorder %s377, 0
      %s380 = sadd.s32 %s379, 1
      %s381 = scalar_select %p378, %s379, %s380
      %p384 = pneg %p378
      %p385 = scmp.eq.s32.totalorder %s25, 1
      %p386 = por %p384, %p385
      %p387 = scmp.ne.s32.totalorder %s379, %s382
      %p388 = scmp.eq.s32.totalorder %s25, 0
      %p389 = por %p387, %p388
      %p390 = scmp.ne.s32.totalorder %s379, %s382
      %p391 = scmp.eq.s32.totalorder %s30, 1
      %p392 = por %p390, %p391
      %p393 = scmp.ne.s32.totalorder %s382, %s383
      %p394 = scmp.eq.s32.totalorder %s30, 0
      %p395 = por %p393, %p394
      %p396 = scmp.ne.s32.totalorder %s382, %s383
      %p397 = scmp.eq.s32.totalorder %s31, 1
      %p398 = por %p396, %p397
      %p400 = scmp.ne.s32.totalorder %s383, %s399
      %p401 = scmp.eq.s32.totalorder %s31, 0
      %p402 = por %p400, %p401
      %s403 = ssub.s32 %s25, %s32
      %p404 = scmp.eq.s32.totalorder %s403, 0
      %s406 = sadd.s32 %s405, 1
      %s407 = scalar_select %p404, %s405, %s406
      %p410 = pneg %p404
      %p411 = scmp.eq.s32.totalorder %s25, 1
      %p412 = por %p410, %p411
      %p413 = scmp.ne.s32.totalorder %s405, %s408
      %p414 = scmp.eq.s32.totalorder %s25, 0
      %p415 = por %p413, %p414
      %p416 = scmp.ne.s32.totalorder %s405, %s408
      %p417 = scmp.eq.s32.totalorder %s30, 1
      %p418 = por %p416, %p417
      %p419 = scmp.ne.s32.totalorder %s408, %s409
      %p420 = scmp.eq.s32.totalorder %s30, 0
      %p421 = por %p419, %p420
      %p422 = scmp.ne.s32.totalorder %s408, %s409
      %p423 = scmp.eq.s32.totalorder %s31, 1
      %p424 = por %p422, %p423
      %p426 = scmp.ne.s32.totalorder %s409, %s425
      %p427 = scmp.eq.s32.totalorder %s31, 0
      %p428 = por %p426, %p427
      %s430 = sadd.s32 %s429, 1
      %p433 = scmp.eq.s32.totalorder %s25, 1
      %p434 = scmp.ne.s32.totalorder %s429, %s431
      %p435 = scmp.eq.s32.totalorder %s25, 0
      %p436 = por %p434, %p435
      %p437 = scmp.ne.s32.totalorder %s429, %s431
      %p438 = scmp.eq.s32.totalorder %s30, 1
      %p439 = por %p437, %p438
      %p440 = scmp.ne.s32.totalorder %s431, %s432
      %p441 = scmp.eq.s32.totalorder %s30, 0
      %p442 = por %p440, %p441
      %p443 = scmp.ne.s32.totalorder %s431, %s432
      %p444 = scmp.eq.s32.totalorder %s31, 1
      %p445 = por %p443, %p444
      %p447 = scmp.ne.s32.totalorder %s432, %s446
      %p448 = scmp.eq.s32.totalorder %s31, 0
      %p449 = por %p447, %p448
      %p450 = scmp.le.s32.totalorder 1, %s25
      %p451 = scmp.lt.s32.totalorder %s25, 3
      %p452 = pnand %p450, %p451
      %p453 = pneg %p452
      // Predicated region
      $region9: #{tpu_custom_call.1} parent=5 // pred_check
        _
      $region10: #{tpu_custom_call.1} parent=5 // pred_check_branch
        %455 = sbr.rel (%p452) target = $region12
      $region11: #{tpu_custom_call.1} parent=5 // pred_region
        %s456 = ssub.s32 %s25, 1
        // Predicated region
        $region13: #{tpu_custom_call.1} parent=11 // pred_check
          %p457 = pneg %p46
        $region14: #{tpu_custom_call.1} parent=11 // pred_check_branch
          %459 = sbr.rel (%p457) target = $region16
        $region15: #{tpu_custom_call.1} parent=11 // pred_region
          %s461 = ssub.s32 256, 256
          %462 = vsyncadd [#allocation5], %s461
          %s463 = sshll.u32 [#allocation4], 4
          %s464 = int_to_ptr.vmem [resolvable:$true] %s463
          %469 = dma.hbm_to_vmem [thread:$0]  %s0, 256, %s464, [#allocation5], 128, 128, 8
        $region16: #{tpu_custom_call.1} parent=11 // pred_fallthru
          _
        // Predicated region
        $region17: #{tpu_custom_call.1} parent=11 // pred_check
          %p470 = pneg %p67
        $region18: #{tpu_custom_call.1} parent=11 // pred_check_branch
          %472 = sbr.rel (%p470) target = $region20
        $region19: #{tpu_custom_call.1} parent=11 // pred_region
          _
        $region20: #{tpu_custom_call.1} parent=11 // pred_fallthru
          _
        // Predicated region
        $region21: #{tpu_custom_call.1} parent=11 // pred_check
          %p473 = pneg %p88
        $region22: #{tpu_custom_call.1} parent=11 // pred_check_branch
          %475 = sbr.rel (%p473) target = $region24
        $region23: #{tpu_custom_call.1} parent=11 // pred_region
          _
        $region24: #{tpu_custom_call.1} parent=11 // pred_fallthru
          _
        // Predicated region
        $region25: #{tpu_custom_call.1} parent=11 // pred_check
          %p476 = pneg %p109
        $region26: #{tpu_custom_call.1} parent=11 // pred_check_branch
          %478 = sbr.rel (%p476) target = $region28
        $region27: #{tpu_custom_call.1} parent=11 // pred_region
          %s480 = ssub.s32 16, 16
          %481 = vsyncadd [#allocation8], %s480
          %s483 = sshll.u32 [#allocation7], 4
          %s484 = int_to_ptr.vmem [resolvable:$true] %s483
          %486 = dma.hbm_to_vmem [thread:$0]  %s3, 16, %s484, [#allocation8]
        $region28: #{tpu_custom_call.1} parent=11 // pred_fallthru
          _
      $region12: #{tpu_custom_call.1} parent=5 // pred_fallthru
        _
      %p487 = scmp.lt.s32.totalorder %s25, 2
      // Predicated region
      $region29: #{tpu_custom_call.1} parent=5 // pred_check
        %p488 = pneg %p487
      $region30: #{tpu_custom_call.1} parent=5 // pred_check_branch
        %490 = sbr.rel (%p488) target = $region32
      $region31: #{tpu_custom_call.1} parent=5 // pred_region
        // Predicated region
        $region33: #{tpu_custom_call.1} parent=31 // pred_check
          %p491 = pneg %p129
        $region34: #{tpu_custom_call.1} parent=31 // pred_check_branch
          %493 = sbr.rel (%p491) target = $region36
        $region35: #{tpu_custom_call.1} parent=31 // pred_region
          %p494 = scmp.lt.s32.totalorder %s25, 1
          %s495 = scalar_select %p494, %s25, 1
          %s496 = smul.addr %s495, 4
          %s497 = smul.addr %s496, 4
          %s498 = scalar_lea.vmem %s4, %s497
        $region36: #{tpu_custom_call.1} parent=31 // pred_fallthru
          _
        // Predicated region
        $region37: #{tpu_custom_call.1} parent=31 // pred_check
          %p499 = pneg %p155
        $region38: #{tpu_custom_call.1} parent=31 // pred_check_branch
          %501 = sbr.rel (%p499) target = $region40
        $region39: #{tpu_custom_call.1} parent=31 // pred_region
          %p502 = scmp.lt.s32.totalorder %s25, 1
          %s503 = scalar_select %p502, %s25, 1
          %s504 = scalar_lea.vmem %s5, %s503
        $region40: #{tpu_custom_call.1} parent=31 // pred_fallthru
          _
        // Predicated region
        $region41: #{tpu_custom_call.1} parent=31 // pred_check
          %p505 = pneg %p181
        $region42: #{tpu_custom_call.1} parent=31 // pred_check_branch
          %507 = sbr.rel (%p505) target = $region44
        $region43: #{tpu_custom_call.1} parent=31 // pred_region
          %p508 = scmp.lt.s32.totalorder %s25, 1
          %s509 = scalar_select %p508, %s25, 1
          %s510 = smul.addr %s509, 4
          %s511 = smul.addr %s510, 4
          %s512 = scalar_lea.vmem %s6, %s511
        $region44: #{tpu_custom_call.1} parent=31 // pred_fallthru
          _
        // Predicated region
        $region45: #{tpu_custom_call.1} parent=31 // pred_check
          %p513 = pneg %p207
        $region46: #{tpu_custom_call.1} parent=31 // pred_check_branch
          %515 = sbr.rel (%p513) target = $region48
        $region47: #{tpu_custom_call.1} parent=31 // pred_region
          %p516 = scmp.lt.s32.totalorder %s25, 1
          %s517 = scalar_select %p516, %s25, 1
          %s518 = scalar_lea.vmem %s7, %s517
        $region48: #{tpu_custom_call.1} parent=31 // pred_fallthru
          _
        // Predicated region
        $region49: #{tpu_custom_call.1} parent=31 // pred_check
          %p519 = pneg %p233
        $region50: #{tpu_custom_call.1} parent=31 // pred_check_branch
          %521 = sbr.rel (%p519) target = $region52
        $region51: #{tpu_custom_call.1} parent=31 // pred_region
          %p522 = scmp.lt.s32.totalorder %s25, 1
          %s523 = scalar_select %p522, %s25, 1
          %s524 = scalar_lea.vmem %s8, %s523
        $region52: #{tpu_custom_call.1} parent=31 // pred_fallthru
          _
        // Predicated region
        $region53: #{tpu_custom_call.1} parent=31 // pred_check
          %p525 = pneg %p259
        $region54: #{tpu_custom_call.1} parent=31 // pred_check_branch
          %527 = sbr.rel (%p525) target = $region56
        $region55: #{tpu_custom_call.1} parent=31 // pred_region
          %p528 = scmp.lt.s32.totalorder %s25, 1
          %s529 = scalar_select %p528, %s25, 1
          %s530 = scalar_lea.vmem %s9, %s529
        $region56: #{tpu_custom_call.1} parent=31 // pred_fallthru
          _
        // Predicated region
        $region57: #{tpu_custom_call.1} parent=31 // pred_check
          %p531 = pneg %p285
        $region58: #{tpu_custom_call.1} parent=31 // pred_check_branch
          %533 = sbr.rel (%p531) target = $region60
        $region59: #{tpu_custom_call.1} parent=31 // pred_region
          %p534 = scmp.lt.s32.totalorder %s25, 1
          %s535 = scalar_select %p534, %s25, 1
          %s536 = smul.addr %s535, 4
          %s537 = smul.addr %s536, 4
          %s538 = scalar_lea.vmem %s10, %s537
        $region60: #{tpu_custom_call.1} parent=31 // pred_fallthru
          _
        // Predicated region
        $region61: #{tpu_custom_call.1} parent=31 // pred_check
          %p539 = pneg %p311
        $region62: #{tpu_custom_call.1} parent=31 // pred_check_branch
          %541 = sbr.rel (%p539) target = $region64
        $region63: #{tpu_custom_call.1} parent=31 // pred_region
          %p542 = scmp.lt.s32.totalorder %s25, 1
          %s543 = scalar_select %p542, %s25, 1
          %s544 = scalar_lea.vmem %s11, %s543
        $region64: #{tpu_custom_call.1} parent=31 // pred_fallthru
          _
        // Predicated region
        $region65: #{tpu_custom_call.1} parent=31 // pred_check
          %p545 = pneg %p337
        $region66: #{tpu_custom_call.1} parent=31 // pred_check_branch
          %547 = sbr.rel (%p545) target = $region68
        $region67: #{tpu_custom_call.1} parent=31 // pred_region
          %p548 = scmp.lt.s32.totalorder %s25, 1
          %s549 = scalar_select %p548, %s25, 1
          %s550 = smul.addr %s549, 8
          %s551 = smul.addr %s550, 4
          %s552 = scalar_lea.vmem %s12, %s551
        $region68: #{tpu_custom_call.1} parent=31 // pred_fallthru
          _
        // Predicated region
        $region69: #{tpu_custom_call.1} parent=31 // pred_check
          %p553 = pneg %p363
        $region70: #{tpu_custom_call.1} parent=31 // pred_check_branch
          %555 = sbr.rel (%p553) target = $region72
        $region71: #{tpu_custom_call.1} parent=31 // pred_region
          %p556 = scmp.lt.s32.totalorder %s25, 1
          %s557 = scalar_select %p556, %s25, 1
          %s558 = scalar_lea.vmem %s13, %s557
        $region72: #{tpu_custom_call.1} parent=31 // pred_fallthru
          _
        // Predicated region
        $region73: #{tpu_custom_call.1} parent=31 // pred_check
          %p559 = pneg %p389
        $region74: #{tpu_custom_call.1} parent=31 // pred_check_branch
          %561 = sbr.rel (%p559) target = $region76
        $region75: #{tpu_custom_call.1} parent=31 // pred_region
          %p562 = scmp.lt.s32.totalorder %s25, 1
          %s563 = scalar_select %p562, %s25, 1
          %s564 = scalar_lea.vmem %s14, %s563
        $region76: #{tpu_custom_call.1} parent=31 // pred_fallthru
          _
        // Predicated region
        $region77: #{tpu_custom_call.1} parent=31 // pred_check
          %p565 = pneg %p415
        $region78: #{tpu_custom_call.1} parent=31 // pred_check_branch
          %567 = sbr.rel (%p565) target = $region80
        $region79: #{tpu_custom_call.1} parent=31 // pred_region
          %p568 = scmp.lt.s32.totalorder %s25, 1
          %s569 = scalar_select %p568, %s25, 1
          %s570 = scalar_lea.vmem %s15, %s569
        $region80: #{tpu_custom_call.1} parent=31 // pred_fallthru
          _
      $region32: #{tpu_custom_call.1} parent=5 // pred_fallthru
        _
      %p571 = scmp.le.s32.totalorder 1, %s25
      %p572 = scmp.lt.s32.totalorder %s25, 3
      %p573 = pnand %p571, %p572
      %p574 = pneg %p573
      // Predicated region
      $region81: #{tpu_custom_call.1} parent=5 // pred_check
        _
      $region82: #{tpu_custom_call.1} parent=5 // pred_check_branch
        %576 = sbr.rel (%p573) target = $region84
      $region83: #{tpu_custom_call.1} parent=5 // pred_region
        %s577 = ssub.s32 %s25, 1
        // Predicated region
        $region85: #{tpu_custom_call.1} parent=83 // pred_check
          %p578 = pneg %p46
        $region86: #{tpu_custom_call.1} parent=83 // pred_check_branch
          %580 = sbr.rel (%p578) target = $region88
        $region87: #{tpu_custom_call.1} parent=83 // pred_region
          %581 = dma.done [#allocation5], 256
        $region88: #{tpu_custom_call.1} parent=83 // pred_fallthru
          _
        // Predicated region
        $region89: #{tpu_custom_call.1} parent=83 // pred_check
          %p582 = pneg %p109
        $region90: #{tpu_custom_call.1} parent=83 // pred_check_branch
          %584 = sbr.rel (%p582) target = $region92
        $region91: #{tpu_custom_call.1} parent=83 // pred_region
          %585 = dma.done [#allocation8], 16
        $region92: #{tpu_custom_call.1} parent=83 // pred_fallthru
          _
        %p586 = pneg %p46
        %p587 = pneg %p43
        %p588 = pneg %p67
        %p589 = pneg %p64
        %p590 = pneg %p88
        %p591 = pneg %p85
        %p592 = pneg %p109
        %p593 = pneg %p106
        %p594 = scmp.lt.s32.totalorder %s30, 1
        %s595 = scalar_select %p594, %s30, 1
        %s596 = smul.addr %s595, 4
        %s597 = smul.addr %s596, 4
        %s598 = scalar_lea.vmem %s4, %s597
        %p599 = pneg %p135
        %p600 = pneg %p132
        %p601 = scmp.lt.s32.totalorder %s30, 1
        %s602 = scalar_select %p601, %s30, 1
        %s603 = scalar_lea.vmem %s5, %s602
        %p604 = pneg %p161
        %p605 = pneg %p158
        %p606 = scmp.lt.s32.totalorder %s30, 1
        %s607 = scalar_select %p606, %s30, 1
        %s608 = smul.addr %s607, 4
        %s609 = smul.addr %s608, 4
        %s610 = scalar_lea.vmem %s6, %s609
        %p611 = pneg %p187
        %p612 = pneg %p184
        %p613 = scmp.lt.s32.totalorder %s30, 1
        %s614 = scalar_select %p613, %s30, 1
        %s615 = scalar_lea.vmem %s7, %s614
        %p616 = pneg %p213
        %p617 = pneg %p210
        %p618 = scmp.lt.s32.totalorder %s30, 1
        %s619 = scalar_select %p618, %s30, 1
        %s620 = scalar_lea.vmem %s8, %s619
        %p621 = pneg %p239
        %p622 = pneg %p236
        %p623 = scmp.lt.s32.totalorder %s30, 1
        %s624 = scalar_select %p623, %s30, 1
        %s625 = scalar_lea.vmem %s9, %s624
        %p626 = pneg %p265
        %p627 = pneg %p262
        %p628 = scmp.lt.s32.totalorder %s30, 1
        %s629 = scalar_select %p628, %s30, 1
        %s630 = smul.addr %s629, 4
        %s631 = smul.addr %s630, 4
        %s632 = scalar_lea.vmem %s10, %s631
        %p633 = pneg %p291
        %p634 = pneg %p288
        %p635 = scmp.lt.s32.totalorder %s30, 1
        %s636 = scalar_select %p635, %s30, 1
        %s637 = scalar_lea.vmem %s11, %s636
        %p638 = pneg %p317
        %p639 = pneg %p314
        %p640 = scmp.lt.s32.totalorder %s30, 1
        %s641 = scalar_select %p640, %s30, 1
        %s642 = smul.addr %s641, 8
        %s643 = smul.addr %s642, 4
        %s644 = scalar_lea.vmem %s12, %s643
        %p645 = pneg %p343
        %p646 = pneg %p340
        %p647 = scmp.lt.s32.totalorder %s30, 1
        %s648 = scalar_select %p647, %s30, 1
        %s649 = scalar_lea.vmem %s13, %s648
        %p650 = pneg %p369
        %p651 = pneg %p366
        %p652 = scmp.lt.s32.totalorder %s30, 1
        %s653 = scalar_select %p652, %s30, 1
        %s654 = scalar_lea.vmem %s14, %s653
        %p655 = pneg %p395
        %p656 = pneg %p392
        %p657 = scmp.lt.s32.totalorder %s30, 1
        %s658 = scalar_select %p657, %s30, 1
        %s659 = scalar_lea.vmem %s15, %s658
        %p660 = pneg %p421
        %p661 = pneg %p418
        %p662 = pneg %p442
        %p663 = pneg %p439
        %p664 = scmp.lt.s32.totalorder %s30, 1
        %s665 = scalar_select %p664, %s30, 1
        %s666 = smul.addr %s665, 4
        %s667 = smul.addr %s666, 4
        %s668 = scalar_lea.vmem %s4, %s667
        %p669 = scmp.lt.s32.totalorder %s30, 1
        %s670 = scalar_select %p669, %s30, 1
        %s671 = scalar_lea.vmem %s5, %s670
        %p672 = scmp.lt.s32.totalorder %s30, 1
        %s673 = scalar_select %p672, %s30, 1
        %s674 = smul.addr %s673, 4
        %s675 = smul.addr %s674, 4
        %s676 = scalar_lea.vmem %s6, %s675
        %p677 = scmp.lt.s32.totalorder %s30, 1
        %s678 = scalar_select %p677, %s30, 1
        %s679 = scalar_lea.vmem %s7, %s678
        %p680 = scmp.lt.s32.totalorder %s30, 1
        %s681 = scalar_select %p680, %s30, 1
        %s682 = scalar_lea.vmem %s8, %s681
        %p683 = scmp.lt.s32.totalorder %s30, 1
        %s684 = scalar_select %p683, %s30, 1
        %s685 = scalar_lea.vmem %s9, %s684
        %p686 = scmp.lt.s32.totalorder %s30, 1
        %s687 = scalar_select %p686, %s30, 1
        %s688 = smul.addr %s687, 4
        %s689 = smul.addr %s688, 4
        %s690 = scalar_lea.vmem %s10, %s689
        %p691 = scmp.lt.s32.totalorder %s30, 1
        %s692 = scalar_select %p691, %s30, 1
        %s693 = scalar_lea.vmem %s11, %s692
        %p694 = scmp.lt.s32.totalorder %s30, 1
        %s695 = scalar_select %p694, %s30, 1
        %s696 = smul.addr %s695, 8
        %s697 = smul.addr %s696, 4
        %s698 = scalar_lea.vmem %s12, %s697
        %p699 = scmp.lt.s32.totalorder %s30, 1
        %s700 = scalar_select %p699, %s30, 1
        %s701 = scalar_lea.vmem %s13, %s700
        %p702 = scmp.lt.s32.totalorder %s30, 1
        %s703 = scalar_select %p702, %s30, 1
        %s704 = scalar_lea.vmem %s14, %s703
        %p705 = scmp.lt.s32.totalorder %s30, 1
        %s706 = scalar_select %p705, %s30, 1
        %s707 = scalar_lea.vmem %s15, %s706
        %p709 = scmp.eq.s32.totalorder %s30, 0
        // Predicated region
        $region93: #{tpu_custom_call.1} parent=83 // pred_check
          %p710 = pneg %p709
        $region94: #{tpu_custom_call.1} parent=83 // pred_check_branch
          %712 = sbr.rel (%p710) target = $region96
        $region95: #{tpu_custom_call.1} parent=83 // pred_region
          %v713 = vld [vmem:[#allocation4] sm:$0xff]
          %v714 = vld [vmem:[#allocation4 + $0x8] sm:$0xff]
          %v715 = vld [vmem:[%s2] sm:$0x1]
          %v716 = vld [vmem:[#allocation7] sm:$0x1]
          %vm717 = vcmask 261120
          %v718 = vsel %vm717, %v713, 0.0
          %719 = vadd.xlane.f32.xlu0 %v718
          %v720 = vpop.xlane.xlu0 %719
          %v721 = vsel %vm717, %v714, 0.0
          %722 = vadd.xlane.f32.xlu0 %v721
          %v723 = vpop.xlane.xlu0 %722
          %v724 = vrcp.pop 32.0
          %v725 = vmul.f32 %v720, %v724
          %v726 = vmul.f32 %v723, %v724
          %v727 = vsub.f32 %v713, %v725
          %v728 = vsub.f32 %v714, %v726
          %v729 = vmul.f32 %v727, %v727
          %v730 = vmul.f32 %v728, %v728
          %v731 = vsel %vm717, %v729, 0.0
          %732 = vadd.xlane.f32.xlu0 %v731
          %v733 = vpop.xlane.xlu0 %732
          %v734 = vsel %vm717, %v730, 0.0
          %735 = vadd.xlane.f32.xlu0 %v734
          %v736 = vpop.xlane.xlu0 %735
          %v737 = vmul.f32 %v733, %v724
          %v738 = vmul.f32 %v736, %v724
          %v739 = vadd.f32 %v737, 1e-12
          %v740 = vadd.f32 %v738, 1e-12
          %v741 = vrsqrt.pop %v739
          %v742 = vrsqrt.pop %v740
          %v743 = vmul.f32 %v727, %v741
          %v744 = vmul.f32 %v728, %v742
          %v746 = vlaneseq
          %v747 = vshrl.u32 %v746, 7
          %v748 = vsub.s32 0, %v747
          %v749 = vrot.slane %v715, %v748
          %v751 = vmul.f32 %v743, %v749
          %v752 = vmul.f32 %v744, %v749
          %v754 = vlaneseq
          %v755 = vshrl.u32 %v754, 7
          %v756 = vsub.s32 0, %v755
          %v757 = vrot.slane %v716, %v756
          %v759 = vadd.f32 %v751, %v757
          %v760 = vadd.f32 %v752, %v757
          %761 = vst.msk [vmem:[#allocation2] sm:$0xff] %vm717, %v759
          %762 = vst.msk [vmem:[#allocation2 + $0x8] sm:$0xff] %vm717, %v760
        $region96: #{tpu_custom_call.1} parent=83 // pred_fallthru
          _
        %v763 = vld [vmem:[#allocation2] sm:$0xff]
        %v764 = vld [vmem:[#allocation2 + $0x8] sm:$0xff]
        %v765 = vpack.c.bf16 %v764, %v763
        %v766 = vld [vmem:[%s668] sm:$0xf]
        %v767 = vld [vmem:[%s668 + $0x4] sm:$0xf]
        %v768 = vld [vmem:[%s668 + $0x8] sm:$0xf]
        %v769 = vld [vmem:[%s668 + $0xc] sm:$0xf]
        %v770 = vld [vmem:[%s671] sm:$0x1]
        %v772 = vlaneseq
        %v773 = vshrl.u32 %v772, 7
        %v774 = vsub.s32 0, %v773
        %v775 = vrot.slane %v770, %v774
        %v781 = vunpack.c.l.b16 %v766
        %v782 = vunpack.c.l.b16 %v767
        %v783 = vunpack.c.l.b16 %v768
        %v784 = vunpack.c.l.b16 %v769
        %v785 = vpack.c.b16 %v782, %v781
        %v786 = vpack.c.b16 %v784, %v783
        %vm789 = vcmask 261120
        %v791 = vsel %vm789, %v765, 0
        %793 = vmatprep.subr.bf16.mxu0 0
        %794 = vmatpush1.bf16.msra.mxu0 %v785
        %795 = vmatprep.subr.bf16.mxu0 0
        %796 = vmatpush1.bf16.msra.mxu0 %v786
        %797 = vmatprep.subr.bf16.mxu0 0
        %798 = vmatpush1.bf16.msra.mxu0 0
        %799 = vmatprep.subr.bf16.mxu0 0
        %800 = vmatpush1.bf16.msra.mxu0 0
        %801 = vmatprep.subr.bf16.mxu0 0
        %802 = vmatpush1.bf16.msra.mxu0 0
        %803 = vmatprep.subr.bf16.mxu0 0
        %804 = vmatpush1.bf16.msra.mxu0 0
        %805 = vmatprep.subr.bf16.mxu0 0
        %806 = vmatpush1.bf16.msra.mxu0 0
        %807 = vmatprep.subr.bf16.mxu0 0
        %808 = vmatpush1.bf16.msra.mxu0 0
        %809 = vmatprep.subr.bf16.mxu0 0
        %810 = vmatpush1.bf16.msra.mxu0 0
        %811 = vmatprep.subr.bf16.mxu0 0
        %812 = vmatpush1.bf16.msra.mxu0 0
        %813 = vmatprep.subr.bf16.mxu0 0
        %814 = vmatpush1.bf16.msra.mxu0 0
        %815 = vmatprep.subr.bf16.mxu0 0
        %816 = vmatpush1.bf16.msra.mxu0 0
        %817 = vmatprep.subr.bf16.mxu0 0
        %818 = vmatpush1.bf16.msra.mxu0 0
        %819 = vmatprep.subr.bf16.mxu0 0
        %820 = vmatpush1.bf16.msra.mxu0 0
        %821 = vmatprep.subr.bf16.mxu0 0
        %822 = vmatpush1.bf16.msra.mxu0 0
        %823 = vmatprep.subr.bf16.mxu0 0
        %824 = vmatpush1.bf16.msra.mxu0 0
        %825 = vmatprep.mubr.bf16.mxu0 0
        %826 = vmatmul.mubr.bf16.gmra.mrb[0].mxu0 %v791
        %v827 = vpop.f32.mrb[0].mxu0
        %v828 = vadd.f32 %v775, %v827
        %v829 = vpop.f32.mrb[0].mxu0
        %v830 = vpop.f32.mrb[0].mxu0
        %v831 = vadd.f32 %v775, %v830
        %v832 = vpop.f32.mrb[0].mxu0
        %833 = vdwg.mxu0
        %v834 = vld [vmem:[%s1] sm:$0x3]
        %v837 = vunpack.c.l.s4 1966171168
        %v838 = vunpack.c.0.s8 %v837
        %v839 = vlaneseq
        %v840 = vshrl.u32 %v839, 7
        %v841 = vsub.s32 %v838, %v840
        %v842 = vrot.slane %v834, %v841
        %v843 = vcombine.high %v842, %v842
        %v845 = vunpack.c.l.s4 1966171168
        %v846 = vunpack.c.0.s8 %v845
        %v847 = vlaneseq
        %v848 = vshrl.u32 %v847, 7
        %v849 = vsub.s32 %v846, %v848
        %v850 = vrot.slane %v842, %v849
        %v852 = vunpack.c.l.s4 1966171168
        %v853 = vunpack.c.0.s8 %v852
        %v854 = vlaneseq
        %v855 = vshrl.u32 %v854, 7
        %v856 = vsub.s32 %v853, %v855
        %v857 = vrot.slane %v843, %v856
        %v858 = vpack.c.bf16 %v828, %v828
        %v859 = vpack.c.bf16 %v831, %v831
        %v860 = vlaneseq
        %v861 = vshrl.u32 %v860, 7
        %v862 = vsub.s32 0, %v861
        %v863 = vrot.slane %v850, %v862
        %v864 = vlaneseq
        %v865 = vshrl.u32 %v864, 7
        %v866 = vsub.s32 0, %v865
        %v867 = vrot.slane %v857, %v866
        %871 = vrot.lane.b32.xlu0 %v858, 96
        %v872 = vpop.permute.xlu0 %871
        %vm873 = vcmask 64512
        %v875 = vsel %vm873, %v858, 0
        %v878 = vsel %vm873, %v872, 0
        %880 = vmatprep.subr.bf16.mxu0 0
        %881 = vmatpush1.bf16.xpose.msra.mxu0 %v878
        %882 = vmatprep.subr.bf16.mxu0 0
        %883 = vmatpush1.bf16.xpose.msra.mxu0 0
        %884 = vmatprep.subr.bf16.mxu0 0
        %885 = vmatpush1.bf16.xpose.msra.mxu0 0
        %886 = vmatprep.subr.bf16.mxu0 0
        %887 = vmatpush1.bf16.xpose.msra.mxu0 0
        %888 = vmatprep.subr.bf16.mxu0 0
        %889 = vmatpush1.bf16.xpose.msra.mxu0 0
        %890 = vmatprep.subr.bf16.mxu0 0
        %891 = vmatpush1.bf16.xpose.msra.mxu0 0
        %892 = vmatprep.subr.bf16.mxu0 0
        %893 = vmatpush1.bf16.xpose.msra.mxu0 0
        %894 = vmatprep.subr.bf16.mxu0 0
        %895 = vmatpush1.bf16.xpose.msra.mxu0 0
        %896 = vmatprep.subr.bf16.mxu0 0
        %897 = vmatpush1.bf16.xpose.msra.mxu0 0
        %898 = vmatprep.subr.bf16.mxu0 0
        %899 = vmatpush1.bf16.xpose.msra.mxu0 0
        %900 = vmatprep.subr.bf16.mxu0 0
        %901 = vmatpush1.bf16.xpose.msra.mxu0 0
        %902 = vmatprep.subr.bf16.mxu0 0
        %903 = vmatpush1.bf16.xpose.msra.mxu0 0
        %904 = vmatprep.subr.bf16.mxu0 0
        %905 = vmatpush1.bf16.xpose.msra.mxu0 0
        %906 = vmatprep.subr.bf16.mxu0 0
        %907 = vmatpush1.bf16.xpose.msra.mxu0 0
        %908 = vmatprep.subr.bf16.mxu0 0
        %909 = vmatpush1.bf16.xpose.msra.mxu0 0
        %910 = vmatprep.subr.bf16.mxu0 0
        %911 = vmatpush1.bf16.xpose.msra.mxu0 0
        %912 = vmatprep.mubr.bf16.mxu0 0
        %913 = vmatmul.mubr.bf16.gmra.mrb[0].mxu0 %v875
        %v914 = vpop.f32.mrb[0].mxu0
        %v915 = vadd.f32 %v863, %v914
        %v916 = vpop.f32.mrb[0].mxu0
        %v917 = vpop.f32.mrb[0].mxu0
        %v918 = vpop.f32.mrb[0].mxu0
        %919 = vdwg.mxu0
        %921 = vrot.lane.b32.xlu0 %v859, 96
        %v922 = vpop.permute.xlu0 %921
        %v924 = vsel %vm873, %v859, 0
        %v927 = vsel %vm873, %v922, 0
        %929 = vmatprep.subr.bf16.mxu0 0
        %930 = vmatpush1.bf16.xpose.msra.mxu0 %v927
        %931 = vmatprep.subr.bf16.mxu0 0
        %932 = vmatpush1.bf16.xpose.msra.mxu0 0
        %933 = vmatprep.subr.bf16.mxu0 0
        %934 = vmatpush1.bf16.xpose.msra.mxu0 0
        %935 = vmatprep.subr.bf16.mxu0 0
        %936 = vmatpush1.bf16.xpose.msra.mxu0 0
        %937 = vmatprep.subr.bf16.mxu0 0
        %938 = vmatpush1.bf16.xpose.msra.mxu0 0
        %939 = vmatprep.subr.bf16.mxu0 0
        %940 = vmatpush1.bf16.xpose.msra.mxu0 0
        %941 = vmatprep.subr.bf16.mxu0 0
        %942 = vmatpush1.bf16.xpose.msra.mxu0 0
        %943 = vmatprep.subr.bf16.mxu0 0
        %944 = vmatpush1.bf16.xpose.msra.mxu0 0
        %945 = vmatprep.subr.bf16.mxu0 0
        %946 = vmatpush1.bf16.xpose.msra.mxu0 0
        %947 = vmatprep.subr.bf16.mxu0 0
        %948 = vmatpush1.bf16.xpose.msra.mxu0 0
        %949 = vmatprep.subr.bf16.mxu0 0
        %950 = vmatpush1.bf16.xpose.msra.mxu0 0
        %951 = vmatprep.subr.bf16.mxu0 0
        %952 = vmatpush1.bf16.xpose.msra.mxu0 0
        %953 = vmatprep.subr.bf16.mxu0 0
        %954 = vmatpush1.bf16.xpose.msra.mxu0 0
        %955 = vmatprep.subr.bf16.mxu0 0
        %956 = vmatpush1.bf16.xpose.msra.mxu0 0
        %957 = vmatprep.subr.bf16.mxu0 0
        %958 = vmatpush1.bf16.xpose.msra.mxu0 0
        %959 = vmatprep.subr.bf16.mxu0 0
        %960 = vmatpush1.bf16.xpose.msra.mxu0 0
        %961 = vmatprep.mubr.bf16.mxu0 0
        %962 = vmatmul.mubr.bf16.gmra.mrb[0].mxu0 %v924
        %v963 = vpop.f32.mrb[0].mxu0
        %v964 = vadd.f32 %v867, %v963
        %v965 = vpop.f32.mrb[0].mxu0
        %v966 = vpop.f32.mrb[0].mxu0
        %v967 = vpop.f32.mrb[0].mxu0
        %968 = vdwg.mxu0
        %v969 = vsel %vm873, %v915, -inf
        %970 = vmax.xlane.f32.xlu0 %v969
        %v971 = vpop.xlane.xlu0 %970
        %v972 = vsel %vm873, %v964, -inf
        %973 = vmax.xlane.f32.xlu0 %v972
        %v974 = vpop.xlane.xlu0 %973
        %v975 = vsub.f32 %v915, %v971
        %v976 = vsub.f32 %v964, %v974
        %v977 = vmul.f32 %v975, 1.442695
        %v978 = vpow.pop %v977
        %v979 = vmul.f32 %v976, 1.442695
        %v980 = vpow.pop %v979
        %v981 = vsel %vm873, %v978, 0.0
        %982 = vadd.xlane.f32.xlu0 %v981
        %v983 = vpop.xlane.xlu0 %982
        %v984 = vsel %vm873, %v980, 0.0
        %985 = vadd.xlane.f32.xlu0 %v984
        %v986 = vpop.xlane.xlu0 %985
        %v987 = vrcp.pop %v983
        %v988 = vrcp.pop %v986
        %v989 = vmul.f32 %v978, %v987
        %v990 = vmul.f32 %v980, %v988
        %v991 = vpack.c.bf16 %v989, %v989
        %v992 = vpack.c.bf16 %v990, %v990
        %993 = vrot.lane.b32.xlu0 %v858, 64
        %v994 = vpop.permute.xlu0 %993
        %v996 = vsel %vm873, %v991, 0
        %vm998 = vcmask 1043456
        %v1000 = vsel %vm998, %v994, 0
        %1002 = vmatprep.subr.bf16.mxu0 0
        %1003 = vmatpush1.bf16.msra.mxu0 %v1000
        %1004 = vmatprep.subr.bf16.mxu0 0
        %1005 = vmatpush1.bf16.msra.mxu0 0
        %1006 = vmatprep.subr.bf16.mxu0 0
        %1007 = vmatpush1.bf16.msra.mxu0 0
        %1008 = vmatprep.subr.bf16.mxu0 0
        %1009 = vmatpush1.bf16.msra.mxu0 0
        %1010 = vmatprep.subr.bf16.mxu0 0
        %1011 = vmatpush1.bf16.msra.mxu0 0
        %1012 = vmatprep.subr.bf16.mxu0 0
        %1013 = vmatpush1.bf16.msra.mxu0 0
        %1014 = vmatprep.subr.bf16.mxu0 0
        %1015 = vmatpush1.bf16.msra.mxu0 0
        %1016 = vmatprep.subr.bf16.mxu0 0
        %1017 = vmatpush1.bf16.msra.mxu0 0
        %1018 = vmatprep.subr.bf16.mxu0 0
        %1019 = vmatpush1.bf16.msra.mxu0 0
        %1020 = vmatprep.subr.bf16.mxu0 0
        %1021 = vmatpush1.bf16.msra.mxu0 0
        %1022 = vmatprep.subr.bf16.mxu0 0
        %1023 = vmatpush1.bf16.msra.mxu0 0
        %1024 = vmatprep.subr.bf16.mxu0 0
        %1025 = vmatpush1.bf16.msra.mxu0 0
        %1026 = vmatprep.subr.bf16.mxu0 0
        %1027 = vmatpush1.bf16.msra.mxu0 0
        %1028 = vmatprep.subr.bf16.mxu0 0
        %1029 = vmatpush1.bf16.msra.mxu0 0
        %1030 = vmatprep.subr.bf16.mxu0 0
        %1031 = vmatpush1.bf16.msra.mxu0 0
        %1032 = vmatprep.subr.bf16.mxu0 0
        %1033 = vmatpush1.bf16.msra.mxu0 0
        %1034 = vmatprep.mubr.bf16.mxu0 0
        %1035 = vmatmul.mubr.bf16.gmra.mrb[0].mxu0 %v996
        %v1036 = vpop.f32.mrb[0].mxu0
        %v1037 = vadd.f32 0.0, %v1036
        %v1038 = vpop.f32.mrb[0].mxu0
        %v1039 = vpop.f32.mrb[0].mxu0
        %v1040 = vpop.f32.mrb[0].mxu0
        %1041 = vdwg.mxu0
        %1042 = vrot.lane.b32.xlu0 %v859, 64
        %v1043 = vpop.permute.xlu0 %1042
        %v1045 = vsel %vm873, %v992, 0
        %v1048 = vsel %vm998, %v1043, 0
        %1050 = vmatprep.subr.bf16.mxu0 0
        %1051 = vmatpush1.bf16.msra.mxu0 %v1048
        %1052 = vmatprep.subr.bf16.mxu0 0
        %1053 = vmatpush1.bf16.msra.mxu0 0
        %1054 = vmatprep.subr.bf16.mxu0 0
        %1055 = vmatpush1.bf16.msra.mxu0 0
        %1056 = vmatprep.subr.bf16.mxu0 0
        %1057 = vmatpush1.bf16.msra.mxu0 0
        %1058 = vmatprep.subr.bf16.mxu0 0
        %1059 = vmatpush1.bf16.msra.mxu0 0
        %1060 = vmatprep.subr.bf16.mxu0 0
        %1061 = vmatpush1.bf16.msra.mxu0 0
        %1062 = vmatprep.subr.bf16.mxu0 0
        %1063 = vmatpush1.bf16.msra.mxu0 0
        %1064 = vmatprep.subr.bf16.mxu0 0
        %1065 = vmatpush1.bf16.msra.mxu0 0
        %1066 = vmatprep.subr.bf16.mxu0 0
        %1067 = vmatpush1.bf16.msra.mxu0 0
        %1068 = vmatprep.subr.bf16.mxu0 0
        %1069 = vmatpush1.bf16.msra.mxu0 0
        %1070 = vmatprep.subr.bf16.mxu0 0
        %1071 = vmatpush1.bf16.msra.mxu0 0
        %1072 = vmatprep.subr.bf16.mxu0 0
        %1073 = vmatpush1.bf16.msra.mxu0 0
        %1074 = vmatprep.subr.bf16.mxu0 0
        %1075 = vmatpush1.bf16.msra.mxu0 0
        %1076 = vmatprep.subr.bf16.mxu0 0
        %1077 = vmatpush1.bf16.msra.mxu0 0
        %1078 = vmatprep.subr.bf16.mxu0 0
        %1079 = vmatpush1.bf16.msra.mxu0 0
        %1080 = vmatprep.subr.bf16.mxu0 0
        %1081 = vmatpush1.bf16.msra.mxu0 0
        %1082 = vmatprep.mubr.bf16.mxu0 0
        %1083 = vmatmul.mubr.bf16.gmra.mrb[0].mxu0 %v1045
        %v1084 = vpop.f32.mrb[0].mxu0
        %v1085 = vadd.f32 0.0, %v1084
        %v1086 = vpop.f32.mrb[0].mxu0
        %v1087 = vpop.f32.mrb[0].mxu0
        %v1088 = vpop.f32.mrb[0].mxu0
        %1089 = vdwg.mxu0
        %1090 = vst.msk [vmem:[#allocation3] sm:$0xff] %vm873, %v1037
        %1091 = vst.msk [vmem:[#allocation3 + $0x8] sm:$0xff] %vm873, %v1085
        %1092 = vrot.lane.b32.xlu0 %v858, 120
        %v1093 = vpop.permute.xlu0 %1092
        %1094 = vrot.lane.b32.xlu0 %v858, 88
        %v1095 = vpop.permute.xlu0 %1094
        %v1097 = vsel %vm873, %v1093, 0
        %v1100 = vsel %vm873, %v1095, 0
        %1102 = vmatprep.subr.bf16.mxu0 0
        %1103 = vmatpush1.bf16.xpose.msra.mxu0 %v1100
        %1104 = vmatprep.subr.bf16.mxu0 0
        %1105 = vmatpush1.bf16.xpose.msra.mxu0 0
        %1106 = vmatprep.subr.bf16.mxu0 0
        %1107 = vmatpush1.bf16.xpose.msra.mxu0 0
        %1108 = vmatprep.subr.bf16.mxu0 0
        %1109 = vmatpush1.bf16.xpose.msra.mxu0 0
        %1110 = vmatprep.subr.bf16.mxu0 0
        %1111 = vmatpush1.bf16.xpose.msra.mxu0 0
        %1112 = vmatprep.subr.bf16.mxu0 0
        %1113 = vmatpush1.bf16.xpose.msra.mxu0 0
        %1114 = vmatprep.subr.bf16.mxu0 0
        %1115 = vmatpush1.bf16.xpose.msra.mxu0 0
        %1116 = vmatprep.subr.bf16.mxu0 0
        %1117 = vmatpush1.bf16.xpose.msra.mxu0 0
        %1118 = vmatprep.subr.bf16.mxu0 0
        %1119 = vmatpush1.bf16.xpose.msra.mxu0 0
        %1120 = vmatprep.subr.bf16.mxu0 0
        %1121 = vmatpush1.bf16.xpose.msra.mxu0 0
        %1122 = vmatprep.subr.bf16.mxu0 0
        %1123 = vmatpush1.bf16.xpose.msra.mxu0 0
        %1124 = vmatprep.subr.bf16.mxu0 0
        %1125 = vmatpush1.bf16.xpose.msra.mxu0 0
        %1126 = vmatprep.subr.bf16.mxu0 0
        %1127 = vmatpush1.bf16.xpose.msra.mxu0 0
        %1128 = vmatprep.subr.bf16.mxu0 0
        %1129 = vmatpush1.bf16.xpose.msra.mxu0 0
        %1130 = vmatprep.subr.bf16.mxu0 0
        %1131 = vmatpush1.bf16.xpose.msra.mxu0 0
        %1132 = vmatprep.subr.bf16.mxu0 0
        %1133 = vmatpush1.bf16.xpose.msra.mxu0 0
        %1134 = vmatprep.mubr.bf16.mxu0 0
        %1135 = vmatmul.mubr.bf16.gmra.mrb[0].mxu0 %v1097
        %v1136 = vpop.f32.mrb[0].mxu0
        %v1137 = vadd.f32 %v863, %v1136
        %v1138 = vpop.f32.mrb[0].mxu0
        %v1139 = vpop.f32.mrb[0].mxu0
        %v1140 = vpop.f32.mrb[0].mxu0
        %1141 = vdwg.mxu0
        %1142 = vrot.lane.b32.xlu0 %v859, 120
        %v1143 = vpop.permute.xlu0 %1142
        %1144 = vrot.lane.b32.xlu0 %v859, 88
        %v1145 = vpop.permute.xlu0 %1144
        %v1147 = vsel %vm873, %v1143, 0
        %v1150 = vsel %vm873, %v1145, 0
        %1152 = vmatprep.subr.bf16.mxu0 0
        %1153 = vmatpush1.bf16.xpose.msra.mxu0 %v1150
        %1154 = vmatprep.subr.bf16.mxu0 0
        %1155 = vmatpush1.bf16.xpose.msra.mxu0 0
        %1156 = vmatprep.subr.bf16.mxu0 0
        %1157 = vmatpush1.bf16.xpose.msra.mxu0 0
        %1158 = vmatprep.subr.bf16.mxu0 0
        %1159 = vmatpush1.bf16.xpose.msra.mxu0 0
        %1160 = vmatprep.subr.bf16.mxu0 0
        %1161 = vmatpush1.bf16.xpose.msra.mxu0 0
        %1162 = vmatprep.subr.bf16.mxu0 0
        %1163 = vmatpush1.bf16.xpose.msra.mxu0 0
        %1164 = vmatprep.subr.bf16.mxu0 0
        %1165 = vmatpush1.bf16.xpose.msra.mxu0 0
        %1166 = vmatprep.subr.bf16.mxu0 0
        %1167 = vmatpush1.bf16.xpose.msra.mxu0 0
        %1168 = vmatprep.subr.bf16.mxu0 0
        %1169 = vmatpush1.bf16.xpose.msra.mxu0 0
        %1170 = vmatprep.subr.bf16.mxu0 0
        %1171 = vmatpush1.bf16.xpose.msra.mxu0 0
        %1172 = vmatprep.subr.bf16.mxu0 0
        %1173 = vmatpush1.bf16.xpose.msra.mxu0 0
        %1174 = vmatprep.subr.bf16.mxu0 0
        %1175 = vmatpush1.bf16.xpose.msra.mxu0 0
        %1176 = vmatprep.subr.bf16.mxu0 0
        %1177 = vmatpush1.bf16.xpose.msra.mxu0 0
        %1178 = vmatprep.subr.bf16.mxu0 0
        %1179 = vmatpush1.bf16.xpose.msra.mxu0 0
        %1180 = vmatprep.subr.bf16.mxu0 0
        %1181 = vmatpush1.bf16.xpose.msra.mxu0 0
        %1182 = vmatprep.subr.bf16.mxu0 0
        %1183 = vmatpush1.bf16.xpose.msra.mxu0 0
        %1184 = vmatprep.mubr.bf16.mxu0 0
        %1185 = vmatmul.mubr.bf16.gmra.mrb[0].mxu0 %v1147
        %v1186 = vpop.f32.mrb[0].mxu0
        %v1187 = vadd.f32 %v867, %v1186
        %v1188 = vpop.f32.mrb[0].mxu0
        %v1189 = vpop.f32.mrb[0].mxu0
        %v1190 = vpop.f32.mrb[0].mxu0
        %1191 = vdwg.mxu0
        %v1192 = vsel %vm873, %v1137, -inf
        %1193 = vmax.xlane.f32.xlu0 %v1192
        %v1194 = vpop.xlane.xlu0 %1193
        %v1195 = vsel %vm873, %v1187, -inf
        %1196 = vmax.xlane.f32.xlu0 %v1195
        %v1197 = vpop.xlane.xlu0 %1196
        %v1198 = vsub.f32 %v1137, %v1194
        %v1199 = vsub.f32 %v1187, %v1197
        %v1200 = vmul.f32 %v1198, 1.442695
        %v1201 = vpow.pop %v1200
        %v1202 = vmul.f32 %v1199, 1.442695
        %v1203 = vpow.pop %v1202
        %v1204 = vsel %vm873, %v1201, 0.0
        %1205 = vadd.xlane.f32.xlu0 %v1204
        %v1206 = vpop.xlane.xlu0 %1205
        %v1207 = vsel %vm873, %v1203, 0.0
        %1208 = vadd.xlane.f32.xlu0 %v1207
        %v1209 = vpop.xlane.xlu0 %1208
        %v1210 = vrcp.pop %v1206
        %v1211 = vrcp.pop %v1209
        %v1212 = vmul.f32 %v1201, %v1210
        %v1213 = vmul.f32 %v1203, %v1211
        %v1214 = vpack.c.bf16 %v1212, %v1212
        %v1215 = vpack.c.bf16 %v1213, %v1213
        %1216 = vrot.lane.b32.xlu0 %v858, 56
        %v1217 = vpop.permute.xlu0 %1216
        %v1219 = vsel %vm873, %v1214, 0
        %v1222 = vsel %vm998, %v1217, 0
        %1224 = vmatprep.subr.bf16.mxu0 0
        %1225 = vmatpush1.bf16.msra.mxu0 %v1222
        %1226 = vmatprep.subr.bf16.mxu0 0
        %1227 = vmatpush1.bf16.msra.mxu0 0
        %1228 = vmatprep.subr.bf16.mxu0 0
        %1229 = vmatpush1.bf16.msra.mxu0 0
        %1230 = vmatprep.subr.bf16.mxu0 0
        %1231 = vmatpush1.bf16.msra.mxu0 0
        %1232 = vmatprep.subr.bf16.mxu0 0
        %1233 = vmatpush1.bf16.msra.mxu0 0
        %1234 = vmatprep.subr.bf16.mxu0 0
        %1235 = vmatpush1.bf16.msra.mxu0 0
        %1236 = vmatprep.subr.bf16.mxu0 0
        %1237 = vmatpush1.bf16.msra.mxu0 0
        %1238 = vmatprep.subr.bf16.mxu0 0
        %1239 = vmatpush1.bf16.msra.mxu0 0
        %1240 = vmatprep.subr.bf16.mxu0 0
        %1241 = vmatpush1.bf16.msra.mxu0 0
        %1242 = vmatprep.subr.bf16.mxu0 0
        %1243 = vmatpush1.bf16.msra.mxu0 0
        %1244 = vmatprep.subr.bf16.mxu0 0
        %1245 = vmatpush1.bf16.msra.mxu0 0
        %1246 = vmatprep.subr.bf16.mxu0 0
        %1247 = vmatpush1.bf16.msra.mxu0 0
        %1248 = vmatprep.subr.bf16.mxu0 0
        %1249 = vmatpush1.bf16.msra.mxu0 0
        %1250 = vmatprep.subr.bf16.mxu0 0
        %1251 = vmatpush1.bf16.msra.mxu0 0
        %1252 = vmatprep.subr.bf16.mxu0 0
        %1253 = vmatpush1.bf16.msra.mxu0 0
        %1254 = vmatprep.subr.bf16.mxu0 0
        %1255 = vmatpush1.bf16.msra.mxu0 0
        %1256 = vmatprep.mubr.bf16.mxu0 0
        %1257 = vmatmul.mubr.bf16.gmra.mrb[0].mxu0 %v1219
        %v1258 = vpop.f32.mrb[0].mxu0
        %v1259 = vadd.f32 0.0, %v1258
        %v1260 = vpop.f32.mrb[0].mxu0
        %v1261 = vpop.f32.mrb[0].mxu0
        %v1262 = vpop.f32.mrb[0].mxu0
        %1263 = vdwg.mxu0
        %1264 = vrot.lane.b32.xlu0 %v859, 56
        %v1265 = vpop.permute.xlu0 %1264
        %v1267 = vsel %vm873, %v1215, 0
        %v1270 = vsel %vm998, %v1265, 0
        %1272 = vmatprep.subr.bf16.mxu0 0
        %1273 = vmatpush1.bf16.msra.mxu0 %v1270
        %1274 = vmatprep.subr.bf16.mxu0 0
        %1275 = vmatpush1.bf16.msra.mxu0 0
        %1276 = vmatprep.subr.bf16.mxu0 0
        %1277 = vmatpush1.bf16.msra.mxu0 0
        %1278 = vmatprep.subr.bf16.mxu0 0
        %1279 = vmatpush1.bf16.msra.mxu0 0
        %1280 = vmatprep.subr.bf16.mxu0 0
        %1281 = vmatpush1.bf16.msra.mxu0 0
        %1282 = vmatprep.subr.bf16.mxu0 0
        %1283 = vmatpush1.bf16.msra.mxu0 0
        %1284 = vmatprep.subr.bf16.mxu0 0
        %1285 = vmatpush1.bf16.msra.mxu0 0
        %1286 = vmatprep.subr.bf16.mxu0 0
        %1287 = vmatpush1.bf16.msra.mxu0 0
        %1288 = vmatprep.subr.bf16.mxu0 0
        %1289 = vmatpush1.bf16.msra.mxu0 0
        %1290 = vmatprep.subr.bf16.mxu0 0
        %1291 = vmatpush1.bf16.msra.mxu0 0
        %1292 = vmatprep.subr.bf16.mxu0 0
        %1293 = vmatpush1.bf16.msra.mxu0 0
        %1294 = vmatprep.subr.bf16.mxu0 0
        %1295 = vmatpush1.bf16.msra.mxu0 0
        %1296 = vmatprep.subr.bf16.mxu0 0
        %1297 = vmatpush1.bf16.msra.mxu0 0
        %1298 = vmatprep.subr.bf16.mxu0 0
        %1299 = vmatpush1.bf16.msra.mxu0 0
        %1300 = vmatprep.subr.bf16.mxu0 0
        %1301 = vmatpush1.bf16.msra.mxu0 0
        %1302 = vmatprep.subr.bf16.mxu0 0
        %1303 = vmatpush1.bf16.msra.mxu0 0
        %1304 = vmatprep.mubr.bf16.mxu0 0
        %1305 = vmatmul.mubr.bf16.gmra.mrb[0].mxu0 %v1267
        %v1306 = vpop.f32.mrb[0].mxu0
        %v1307 = vadd.f32 0.0, %v1306
        %v1308 = vpop.f32.mrb[0].mxu0
        %v1309 = vpop.f32.mrb[0].mxu0
        %v1310 = vpop.f32.mrb[0].mxu0
        %1311 = vdwg.mxu0
        %1314 = vrot.lane.b32.xlu0 %v1259, 8
        %v1315 = vpop.permute.xlu0 %1314
        %1316 = vrot.lane.b32.xlu0 %v1307, 8
        %v1317 = vpop.permute.xlu0 %1316
        %vm1320 = vcmask 130112
        %1321 = vst.msk [vmem:[#allocation3] sm:$0xff] %vm1320, %v1315
        %1322 = vst.msk [vmem:[#allocation3 + $0x8] sm:$0xff] %vm1320, %v1317
        %1323 = vrot.lane.b32.xlu0 %v858, 112
        %v1324 = vpop.permute.xlu0 %1323
        %1325 = vrot.lane.b32.xlu0 %v858, 80
        %v1326 = vpop.permute.xlu0 %1325
        %v1328 = vsel %vm873, %v1324, 0
        %v1331 = vsel %vm873, %v1326, 0
        %1333 = vmatprep.subr.bf16.mxu0 0
        %1334 = vmatpush1.bf16.xpose.msra.mxu0 %v1331
        %1335 = vmatprep.subr.bf16.mxu0 0
        %1336 = vmatpush1.bf16.xpose.msra.mxu0 0
        %1337 = vmatprep.subr.bf16.mxu0 0
        %1338 = vmatpush1.bf16.xpose.msra.mxu0 0
        %1339 = vmatprep.subr.bf16.mxu0 0
        %1340 = vmatpush1.bf16.xpose.msra.mxu0 0
        %1341 = vmatprep.subr.bf16.mxu0 0
        %1342 = vmatpush1.bf16.xpose.msra.mxu0 0
        %1343 = vmatprep.subr.bf16.mxu0 0
        %1344 = vmatpush1.bf16.xpose.msra.mxu0 0
        %1345 = vmatprep.subr.bf16.mxu0 0
        %1346 = vmatpush1.bf16.xpose.msra.mxu0 0
        %1347 = vmatprep.subr.bf16.mxu0 0
        %1348 = vmatpush1.bf16.xpose.msra.mxu0 0
        %1349 = vmatprep.subr.bf16.mxu0 0
        %1350 = vmatpush1.bf16.xpose.msra.mxu0 0
        %1351 = vmatprep.subr.bf16.mxu0 0
        %1352 = vmatpush1.bf16.xpose.msra.mxu0 0
        %1353 = vmatprep.subr.bf16.mxu0 0
        %1354 = vmatpush1.bf16.xpose.msra.mxu0 0
        %1355 = vmatprep.subr.bf16.mxu0 0
        %1356 = vmatpush1.bf16.xpose.msra.mxu0 0
        %1357 = vmatprep.subr.bf16.mxu0 0
        %1358 = vmatpush1.bf16.xpose.msra.mxu0 0
        %1359 = vmatprep.subr.bf16.mxu0 0
        %1360 = vmatpush1.bf16.xpose.msra.mxu0 0
        %1361 = vmatprep.subr.bf16.mxu0 0
        %1362 = vmatpush1.bf16.xpose.msra.mxu0 0
        %1363 = vmatprep.subr.bf16.mxu0 0
        %1364 = vmatpush1.bf16.xpose.msra.mxu0 0
        %1365 = vmatprep.mubr.bf16.mxu0 0
        %1366 = vmatmul.mubr.bf16.gmra.mrb[0].mxu0 %v1328
        %v1367 = vpop.f32.mrb[0].mxu0
        %v1368 = vadd.f32 %v863, %v1367
        %v1369 = vpop.f32.mrb[0].mxu0
        %v1370 = vpop.f32.mrb[0].mxu0
        %v1371 = vpop.f32.mrb[0].mxu0
        %1372 = vdwg.mxu0
        %1373 = vrot.lane.b32.xlu0 %v859, 112
        %v1374 = vpop.permute.xlu0 %1373
        %1375 = vrot.lane.b32.xlu0 %v859, 80
        %v1376 = vpop.permute.xlu0 %1375
        %v1378 = vsel %vm873, %v1374, 0
        %v1381 = vsel %vm873, %v1376, 0
        %1383 = vmatprep.subr.bf16.mxu0 0
        %1384 = vmatpush1.bf16.xpose.msra.mxu0 %v1381
        %1385 = vmatprep.subr.bf16.mxu0 0
        %1386 = vmatpush1.bf16.xpose.msra.mxu0 0
        %1387 = vmatprep.subr.bf16.mxu0 0
        %1388 = vmatpush1.bf16.xpose.msra.mxu0 0
        %1389 = vmatprep.subr.bf16.mxu0 0
        %1390 = vmatpush1.bf16.xpose.msra.mxu0 0
        %1391 = vmatprep.subr.bf16.mxu0 0
        %1392 = vmatpush1.bf16.xpose.msra.mxu0 0
        %1393 = vmatprep.subr.bf16.mxu0 0
        %1394 = vmatpush1.bf16.xpose.msra.mxu0 0
        %1395 = vmatprep.subr.bf16.mxu0 0
        %1396 = vmatpush1.bf16.xpose.msra.mxu0 0
        %1397 = vmatprep.subr.bf16.mxu0 0
        %1398 = vmatpush1.bf16.xpose.msra.mxu0 0
        %1399 = vmatprep.subr.bf16.mxu0 0
        %1400 = vmatpush1.bf16.xpose.msra.mxu0 0
        %1401 = vmatprep.subr.bf16.mxu0 0
        %1402 = vmatpush1.bf16.xpose.msra.mxu0 0
        %1403 = vmatprep.subr.bf16.mxu0 0
        %1404 = vmatpush1.bf16.xpose.msra.mxu0 0
        %1405 = vmatprep.subr.bf16.mxu0 0
        %1406 = vmatpush1.bf16.xpose.msra.mxu0 0
        %1407 = vmatprep.subr.bf16.mxu0 0
        %1408 = vmatpush1.bf16.xpose.msra.mxu0 0
        %1409 = vmatprep.subr.bf16.mxu0 0
        %1410 = vmatpush1.bf16.xpose.msra.mxu0 0
        %1411 = vmatprep.subr.bf16.mxu0 0
        %1412 = vmatpush1.bf16.xpose.msra.mxu0 0
        %1413 = vmatprep.subr.bf16.mxu0 0
        %1414 = vmatpush1.bf16.xpose.msra.mxu0 0
        %1415 = vmatprep.mubr.bf16.mxu0 0
        %1416 = vmatmul.mubr.bf16.gmra.mrb[0].mxu0 %v1378
        %v1417 = vpop.f32.mrb[0].mxu0
        %v1418 = vadd.f32 %v867, %v1417
        %v1419 = vpop.f32.mrb[0].mxu0
        %v1420 = vpop.f32.mrb[0].mxu0
        %v1421 = vpop.f32.mrb[0].mxu0
        %1422 = vdwg.mxu0
        %v1423 = vsel %vm873, %v1368, -inf
        %1424 = vmax.xlane.f32.xlu0 %v1423
        %v1425 = vpop.xlane.xlu0 %1424
        %v1426 = vsel %vm873, %v1418, -inf
        %1427 = vmax.xlane.f32.xlu0 %v1426
        %v1428 = vpop.xlane.xlu0 %1427
        %v1429 = vsub.f32 %v1368, %v1425
        %v1430 = vsub.f32 %v1418, %v1428
        %v1431 = vmul.f32 %v1429, 1.442695
        %v1432 = vpow.pop %v1431
        %v1433 = vmul.f32 %v1430, 1.442695
        %v1434 = vpow.pop %v1433
        %v1435 = vsel %vm873, %v1432, 0.0
        %1436 = vadd.xlane.f32.xlu0 %v1435
        %v1437 = vpop.xlane.xlu0 %1436
        %v1438 = vsel %vm873, %v1434, 0.0
        %1439 = vadd.xlane.f32.xlu0 %v1438
        %v1440 = vpop.xlane.xlu0 %1439
        %v1441 = vrcp.pop %v1437
        %v1442 = vrcp.pop %v1440
        %v1443 = vmul.f32 %v1432, %v1441
        %v1444 = vmul.f32 %v1434, %v1442
        %v1445 = vpack.c.bf16 %v1443, %v1443
        %v1446 = vpack.c.bf16 %v1444, %v1444
        %1447 = vrot.lane.b32.xlu0 %v858, 48
        %v1448 = vpop.permute.xlu0 %1447
        %v1450 = vsel %vm873, %v1445, 0
        %v1453 = vsel %vm998, %v1448, 0
        %1455 = vmatprep.subr.bf16.mxu0 0
        %1456 = vmatpush1.bf16.msra.mxu0 %v1453
        %1457 = vmatprep.subr.bf16.mxu0 0
        %1458 = vmatpush1.bf16.msra.mxu0 0
        %1459 = vmatprep.subr.bf16.mxu0 0
        %1460 = vmatpush1.bf16.msra.mxu0 0
        %1461 = vmatprep.subr.bf16.mxu0 0
        %1462 = vmatpush1.bf16.msra.mxu0 0
        %1463 = vmatprep.subr.bf16.mxu0 0
        %1464 = vmatpush1.bf16.msra.mxu0 0
        %1465 = vmatprep.subr.bf16.mxu0 0
        %1466 = vmatpush1.bf16.msra.mxu0 0
        %1467 = vmatprep.subr.bf16.mxu0 0
        %1468 = vmatpush1.bf16.msra.mxu0 0
        %1469 = vmatprep.subr.bf16.mxu0 0
        %1470 = vmatpush1.bf16.msra.mxu0 0
        %1471 = vmatprep.subr.bf16.mxu0 0
        %1472 = vmatpush1.bf16.msra.mxu0 0
        %1473 = vmatprep.subr.bf16.mxu0 0
        %1474 = vmatpush1.bf16.msra.mxu0 0
        %1475 = vmatprep.subr.bf16.mxu0 0
        %1476 = vmatpush1.bf16.msra.mxu0 0
        %1477 = vmatprep.subr.bf16.mxu0 0
        %1478 = vmatpush1.bf16.msra.mxu0 0
        %1479 = vmatprep.subr.bf16.mxu0 0
        %1480 = vmatpush1.bf16.msra.mxu0 0
        %1481 = vmatprep.subr.bf16.mxu0 0
        %1482 = vmatpush1.bf16.msra.mxu0 0
        %1483 = vmatprep.subr.bf16.mxu0 0
        %1484 = vmatpush1.bf16.msra.mxu0 0
        %1485 = vmatprep.subr.bf16.mxu0 0
        %1486 = vmatpush1.bf16.msra.mxu0 0
        %1487 = vmatprep.mubr.bf16.mxu0 0
        %1488 = vmatmul.mubr.bf16.gmra.mrb[0].mxu0 %v1450
        %v1489 = vpop.f32.mrb[0].mxu0
        %v1490 = vadd.f32 0.0, %v1489
        %v1491 = vpop.f32.mrb[0].mxu0
        %v1492 = vpop.f32.mrb[0].mxu0
        %v1493 = vpop.f32.mrb[0].mxu0
        %1494 = vdwg.mxu0
        %1495 = vrot.lane.b32.xlu0 %v859, 48
        %v1496 = vpop.permute.xlu0 %1495
        %v1498 = vsel %vm873, %v1446, 0
        %v1501 = vsel %vm998, %v1496, 0
        %1503 = vmatprep.subr.bf16.mxu0 0
        %1504 = vmatpush1.bf16.msra.mxu0 %v1501
        %1505 = vmatprep.subr.bf16.mxu0 0
        %1506 = vmatpush1.bf16.msra.mxu0 0
        %1507 = vmatprep.subr.bf16.mxu0 0
        %1508 = vmatpush1.bf16.msra.mxu0 0
        %1509 = vmatprep.subr.bf16.mxu0 0
        %1510 = vmatpush1.bf16.msra.mxu0 0
        %1511 = vmatprep.subr.bf16.mxu0 0
        %1512 = vmatpush1.bf16.msra.mxu0 0
        %1513 = vmatprep.subr.bf16.mxu0 0
        %1514 = vmatpush1.bf16.msra.mxu0 0
        %1515 = vmatprep.subr.bf16.mxu0 0
        %1516 = vmatpush1.bf16.msra.mxu0 0
        %1517 = vmatprep.subr.bf16.mxu0 0
        %1518 = vmatpush1.bf16.msra.mxu0 0
        %1519 = vmatprep.subr.bf16.mxu0 0
        %1520 = vmatpush1.bf16.msra.mxu0 0
        %1521 = vmatprep.subr.bf16.mxu0 0
        %1522 = vmatpush1.bf16.msra.mxu0 0
        %1523 = vmatprep.subr.bf16.mxu0 0
        %1524 = vmatpush1.bf16.msra.mxu0 0
        %1525 = vmatprep.subr.bf16.mxu0 0
        %1526 = vmatpush1.bf16.msra.mxu0 0
        %1527 = vmatprep.subr.bf16.mxu0 0
        %1528 = vmatpush1.bf16.msra.mxu0 0
        %1529 = vmatprep.subr.bf16.mxu0 0
        %1530 = vmatpush1.bf16.msra.mxu0 0
        %1531 = vmatprep.subr.bf16.mxu0 0
        %1532 = vmatpush1.bf16.msra.mxu0 0
        %1533 = vmatprep.subr.bf16.mxu0 0
        %1534 = vmatpush1.bf16.msra.mxu0 0
        %1535 = vmatprep.mubr.bf16.mxu0 0
        %1536 = vmatmul.mubr.bf16.gmra.mrb[0].mxu0 %v1498
        %v1537 = vpop.f32.mrb[0].mxu0
        %v1538 = vadd.f32 0.0, %v1537
        %v1539 = vpop.f32.mrb[0].mxu0
        %v1540 = vpop.f32.mrb[0].mxu0
        %v1541 = vpop.f32.mrb[0].mxu0
        %1542 = vdwg.mxu0
        %1545 = vrot.lane.b32.xlu0 %v1490, 16
        %v1546 = vpop.permute.xlu0 %1545
        %1547 = vrot.lane.b32.xlu0 %v1538, 16
        %v1548 = vpop.permute.xlu0 %1547
        %vm1551 = vcmask 195712
        %1552 = vst.msk [vmem:[#allocation3] sm:$0xff] %vm1551, %v1546
        %1553 = vst.msk [vmem:[#allocation3 + $0x8] sm:$0xff] %vm1551, %v1548
        %1554 = vrot.lane.b32.xlu0 %v858, 104
        %v1555 = vpop.permute.xlu0 %1554
        %1556 = vrot.lane.b32.xlu0 %v858, 72
        %v1557 = vpop.permute.xlu0 %1556
        %v1559 = vsel %vm873, %v1555, 0
        %v1562 = vsel %vm873, %v1557, 0
        %1564 = vmatprep.subr.bf16.mxu0 0
        %1565 = vmatpush1.bf16.xpose.msra.mxu0 %v1562
        %1566 = vmatprep.subr.bf16.mxu0 0
        %1567 = vmatpush1.bf16.xpose.msra.mxu0 0
        %1568 = vmatprep.subr.bf16.mxu0 0
        %1569 = vmatpush1.bf16.xpose.msra.mxu0 0
        %1570 = vmatprep.subr.bf16.mxu0 0
        %1571 = vmatpush1.bf16.xpose.msra.mxu0 0
        %1572 = vmatprep.subr.bf16.mxu0 0
        %1573 = vmatpush1.bf16.xpose.msra.mxu0 0
        %1574 = vmatprep.subr.bf16.mxu0 0
        %1575 = vmatpush1.bf16.xpose.msra.mxu0 0
        %1576 = vmatprep.subr.bf16.mxu0 0
        %1577 = vmatpush1.bf16.xpose.msra.mxu0 0
        %1578 = vmatprep.subr.bf16.mxu0 0
        %1579 = vmatpush1.bf16.xpose.msra.mxu0 0
        %1580 = vmatprep.subr.bf16.mxu0 0
        %1581 = vmatpush1.bf16.xpose.msra.mxu0 0
        %1582 = vmatprep.subr.bf16.mxu0 0
        %1583 = vmatpush1.bf16.xpose.msra.mxu0 0
        %1584 = vmatprep.subr.bf16.mxu0 0
        %1585 = vmatpush1.bf16.xpose.msra.mxu0 0
        %1586 = vmatprep.subr.bf16.mxu0 0
        %1587 = vmatpush1.bf16.xpose.msra.mxu0 0
        %1588 = vmatprep.subr.bf16.mxu0 0
        %1589 = vmatpush1.bf16.xpose.msra.mxu0 0
        %1590 = vmatprep.subr.bf16.mxu0 0
        %1591 = vmatpush1.bf16.xpose.msra.mxu0 0
        %1592 = vmatprep.subr.bf16.mxu0 0
        %1593 = vmatpush1.bf16.xpose.msra.mxu0 0
        %1594 = vmatprep.subr.bf16.mxu0 0
        %1595 = vmatpush1.bf16.xpose.msra.mxu0 0
        %1596 = vmatprep.mubr.bf16.mxu0 0
        %1597 = vmatmul.mubr.bf16.gmra.mrb[0].mxu0 %v1559
        %v1598 = vpop.f32.mrb[0].mxu0
        %v1599 = vadd.f32 %v863, %v1598
        %v1600 = vpop.f32.mrb[0].mxu0
        %v1601 = vpop.f32.mrb[0].mxu0
        %v1602 = vpop.f32.mrb[0].mxu0
        %1603 = vdwg.mxu0
        %1604 = vrot.lane.b32.xlu0 %v859, 104
        %v1605 = vpop.permute.xlu0 %1604
        %1606 = vrot.lane.b32.xlu0 %v859, 72
        %v1607 = vpop.permute.xlu0 %1606
        %v1609 = vsel %vm873, %v1605, 0
        %v1612 = vsel %vm873, %v1607, 0
        %1614 = vmatprep.subr.bf16.mxu0 0
        %1615 = vmatpush1.bf16.xpose.msra.mxu0 %v1612
        %1616 = vmatprep.subr.bf16.mxu0 0
        %1617 = vmatpush1.bf16.xpose.msra.mxu0 0
        %1618 = vmatprep.subr.bf16.mxu0 0
        %1619 = vmatpush1.bf16.xpose.msra.mxu0 0
        %1620 = vmatprep.subr.bf16.mxu0 0
        %1621 = vmatpush1.bf16.xpose.msra.mxu0 0
        %1622 = vmatprep.subr.bf16.mxu0 0
        %1623 = vmatpush1.bf16.xpose.msra.mxu0 0
        %1624 = vmatprep.subr.bf16.mxu0 0
        %1625 = vmatpush1.bf16.xpose.msra.mxu0 0
        %1626 = vmatprep.subr.bf16.mxu0 0
        %1627 = vmatpush1.bf16.xpose.msra.mxu0 0
        %1628 = vmatprep.subr.bf16.mxu0 0
        %1629 = vmatpush1.bf16.xpose.msra.mxu0 0
        %1630 = vmatprep.subr.bf16.mxu0 0
        %1631 = vmatpush1.bf16.xpose.msra.mxu0 0
        %1632 = vmatprep.subr.bf16.mxu0 0
        %1633 = vmatpush1.bf16.xpose.msra.mxu0 0
        %1634 = vmatprep.subr.bf16.mxu0 0
        %1635 = vmatpush1.bf16.xpose.msra.mxu0 0
        %1636 = vmatprep.subr.bf16.mxu0 0
        %1637 = vmatpush1.bf16.xpose.msra.mxu0 0
        %1638 = vmatprep.subr.bf16.mxu0 0
        %1639 = vmatpush1.bf16.xpose.msra.mxu0 0
        %1640 = vmatprep.subr.bf16.mxu0 0
        %1641 = vmatpush1.bf16.xpose.msra.mxu0 0
        %1642 = vmatprep.subr.bf16.mxu0 0
        %1643 = vmatpush1.bf16.xpose.msra.mxu0 0
        %1644 = vmatprep.subr.bf16.mxu0 0
        %1645 = vmatpush1.bf16.xpose.msra.mxu0 0
        %1646 = vmatprep.mubr.bf16.mxu0 0
        %1647 = vmatmul.mubr.bf16.gmra.mrb[0].mxu0 %v1609
        %v1648 = vpop.f32.mrb[0].mxu0
        %v1649 = vadd.f32 %v867, %v1648
        %v1650 = vpop.f32.mrb[0].mxu0
        %v1651 = vpop.f32.mrb[0].mxu0
        %v1652 = vpop.f32.mrb[0].mxu0
        %1653 = vdwg.mxu0
        %v1654 = vsel %vm873, %v1599, -inf
        %1655 = vmax.xlane.f32.xlu0 %v1654
        %v1656 = vpop.xlane.xlu0 %1655
        %v1657 = vsel %vm873, %v1649, -inf
        %1658 = vmax.xlane.f32.xlu0 %v1657
        %v1659 = vpop.xlane.xlu0 %1658
        %v1660 = vsub.f32 %v1599, %v1656
        %v1661 = vsub.f32 %v1649, %v1659
        %v1662 = vmul.f32 %v1660, 1.442695
        %v1663 = vpow.pop %v1662
        %v1664 = vmul.f32 %v1661, 1.442695
        %v1665 = vpow.pop %v1664
        %v1666 = vsel %vm873, %v1663, 0.0
        %1667 = vadd.xlane.f32.xlu0 %v1666
        %v1668 = vpop.xlane.xlu0 %1667
        %v1669 = vsel %vm873, %v1665, 0.0
        %1670 = vadd.xlane.f32.xlu0 %v1669
        %v1671 = vpop.xlane.xlu0 %1670
        %v1672 = vrcp.pop %v1668
        %v1673 = vrcp.pop %v1671
        %v1674 = vmul.f32 %v1663, %v1672
        %v1675 = vmul.f32 %v1665, %v1673
        %v1676 = vpack.c.bf16 %v1674, %v1674
        %v1677 = vpack.c.bf16 %v1675, %v1675
        %1678 = vrot.lane.b32.xlu0 %v858, 40
        %v1679 = vpop.permute.xlu0 %1678
        %v1681 = vsel %vm873, %v1676, 0
        %v1684 = vsel %vm998, %v1679, 0
        %1686 = vmatprep.subr.bf16.mxu0 0
        %1687 = vmatpush1.bf16.msra.mxu0 %v1684
        %1688 = vmatprep.subr.bf16.mxu0 0
        %1689 = vmatpush1.bf16.msra.mxu0 0
        %1690 = vmatprep.subr.bf16.mxu0 0
        %1691 = vmatpush1.bf16.msra.mxu0 0
        %1692 = vmatprep.subr.bf16.mxu0 0
        %1693 = vmatpush1.bf16.msra.mxu0 0
        %1694 = vmatprep.subr.bf16.mxu0 0
        %1695 = vmatpush1.bf16.msra.mxu0 0
        %1696 = vmatprep.subr.bf16.mxu0 0
        %1697 = vmatpush1.bf16.msra.mxu0 0
        %1698 = vmatprep.subr.bf16.mxu0 0
        %1699 = vmatpush1.bf16.msra.mxu0 0
        %1700 = vmatprep.subr.bf16.mxu0 0
        %1701 = vmatpush1.bf16.msra.mxu0 0
        %1702 = vmatprep.subr.bf16.mxu0 0
        %1703 = vmatpush1.bf16.msra.mxu0 0
        %1704 = vmatprep.subr.bf16.mxu0 0
        %1705 = vmatpush1.bf16.msra.mxu0 0
        %1706 = vmatprep.subr.bf16.mxu0 0
        %1707 = vmatpush1.bf16.msra.mxu0 0
        %1708 = vmatprep.subr.bf16.mxu0 0
        %1709 = vmatpush1.bf16.msra.mxu0 0
        %1710 = vmatprep.subr.bf16.mxu0 0
        %1711 = vmatpush1.bf16.msra.mxu0 0
        %1712 = vmatprep.subr.bf16.mxu0 0
        %1713 = vmatpush1.bf16.msra.mxu0 0
        %1714 = vmatprep.subr.bf16.mxu0 0
        %1715 = vmatpush1.bf16.msra.mxu0 0
        %1716 = vmatprep.subr.bf16.mxu0 0
        %1717 = vmatpush1.bf16.msra.mxu0 0
        %1718 = vmatprep.mubr.bf16.mxu0 0
        %1719 = vmatmul.mubr.bf16.gmra.mrb[0].mxu0 %v1681
        %v1720 = vpop.f32.mrb[0].mxu0
        %v1721 = vadd.f32 0.0, %v1720
        %v1722 = vpop.f32.mrb[0].mxu0
        %v1723 = vpop.f32.mrb[0].mxu0
        %v1724 = vpop.f32.mrb[0].mxu0
        %1725 = vdwg.mxu0
        %1726 = vrot.lane.b32.xlu0 %v859, 40
        %v1727 = vpop.permute.xlu0 %1726
        %v1729 = vsel %vm873, %v1677, 0
        %v1732 = vsel %vm998, %v1727, 0
        %1734 = vmatprep.subr.bf16.mxu0 0
        %1735 = vmatpush1.bf16.msra.mxu0 %v1732
        %1736 = vmatprep.subr.bf16.mxu0 0
        %1737 = vmatpush1.bf16.msra.mxu0 0
        %1738 = vmatprep.subr.bf16.mxu0 0
        %1739 = vmatpush1.bf16.msra.mxu0 0
        %1740 = vmatprep.subr.bf16.mxu0 0
        %1741 = vmatpush1.bf16.msra.mxu0 0
        %1742 = vmatprep.subr.bf16.mxu0 0
        %1743 = vmatpush1.bf16.msra.mxu0 0
        %1744 = vmatprep.subr.bf16.mxu0 0
        %1745 = vmatpush1.bf16.msra.mxu0 0
        %1746 = vmatprep.subr.bf16.mxu0 0
        %1747 = vmatpush1.bf16.msra.mxu0 0
        %1748 = vmatprep.subr.bf16.mxu0 0
        %1749 = vmatpush1.bf16.msra.mxu0 0
        %1750 = vmatprep.subr.bf16.mxu0 0
        %1751 = vmatpush1.bf16.msra.mxu0 0
        %1752 = vmatprep.subr.bf16.mxu0 0
        %1753 = vmatpush1.bf16.msra.mxu0 0
        %1754 = vmatprep.subr.bf16.mxu0 0
        %1755 = vmatpush1.bf16.msra.mxu0 0
        %1756 = vmatprep.subr.bf16.mxu0 0
        %1757 = vmatpush1.bf16.msra.mxu0 0
        %1758 = vmatprep.subr.bf16.mxu0 0
        %1759 = vmatpush1.bf16.msra.mxu0 0
        %1760 = vmatprep.subr.bf16.mxu0 0
        %1761 = vmatpush1.bf16.msra.mxu0 0
        %1762 = vmatprep.subr.bf16.mxu0 0
        %1763 = vmatpush1.bf16.msra.mxu0 0
        %1764 = vmatprep.subr.bf16.mxu0 0
        %1765 = vmatpush1.bf16.msra.mxu0 0
        %1766 = vmatprep.mubr.bf16.mxu0 0
        %1767 = vmatmul.mubr.bf16.gmra.mrb[0].mxu0 %v1729
        %v1768 = vpop.f32.mrb[0].mxu0
        %v1769 = vadd.f32 0.0, %v1768
        %v1770 = vpop.f32.mrb[0].mxu0
        %v1771 = vpop.f32.mrb[0].mxu0
        %v1772 = vpop.f32.mrb[0].mxu0
        %1773 = vdwg.mxu0
        %1776 = vrot.lane.b32.xlu0 %v1721, 24
        %v1777 = vpop.permute.xlu0 %1776
        %1778 = vrot.lane.b32.xlu0 %v1769, 24
        %v1779 = vpop.permute.xlu0 %1778
        %vm1782 = vcmask 261312
        %1783 = vst.msk [vmem:[#allocation3] sm:$0xff] %vm1782, %v1777
        %1784 = vst.msk [vmem:[#allocation3 + $0x8] sm:$0xff] %vm1782, %v1779
        %v1785 = vld [vmem:[#allocation3] sm:$0xff]
        %v1786 = vld [vmem:[#allocation3 + $0x8] sm:$0xff]
        %v1787 = vpack.c.bf16 %v1786, %v1785
        %v1788 = vld [vmem:[%s676] sm:$0xf]
        %v1789 = vld [vmem:[%s676 + $0x4] sm:$0xf]
        %v1790 = vld [vmem:[%s676 + $0x8] sm:$0xf]
        %v1791 = vld [vmem:[%s676 + $0xc] sm:$0xf]
        %v1792 = vld [vmem:[%s679] sm:$0x1]
        %v1794 = vlaneseq
        %v1795 = vshrl.u32 %v1794, 7
        %v1796 = vsub.s32 0, %v1795
        %v1797 = vrot.slane %v1792, %v1796
        %v1803 = vunpack.c.l.b16 %v1788
        %v1804 = vunpack.c.l.b16 %v1789
        %v1805 = vunpack.c.l.b16 %v1790
        %v1806 = vunpack.c.l.b16 %v1791
        %v1807 = vpack.c.b16 %v1804, %v1803
        %v1808 = vpack.c.b16 %v1806, %v1805
        %v1812 = vsel %vm789, %v1787, 0
        %1814 = vmatprep.subr.bf16.mxu0 0
        %1815 = vmatpush1.bf16.msra.mxu0 %v1807
        %1816 = vmatprep.subr.bf16.mxu0 0
        %1817 = vmatpush1.bf16.msra.mxu0 %v1808
        %1818 = vmatprep.subr.bf16.mxu0 0
        %1819 = vmatpush1.bf16.msra.mxu0 0
        %1820 = vmatprep.subr.bf16.mxu0 0
        %1821 = vmatpush1.bf16.msra.mxu0 0
        %1822 = vmatprep.subr.bf16.mxu0 0
        %1823 = vmatpush1.bf16.msra.mxu0 0
        %1824 = vmatprep.subr.bf16.mxu0 0
        %1825 = vmatpush1.bf16.msra.mxu0 0
        %1826 = vmatprep.subr.bf16.mxu0 0
        %1827 = vmatpush1.bf16.msra.mxu0 0
        %1828 = vmatprep.subr.bf16.mxu0 0
        %1829 = vmatpush1.bf16.msra.mxu0 0
        %1830 = vmatprep.subr.bf16.mxu0 0
        %1831 = vmatpush1.bf16.msra.mxu0 0
        %1832 = vmatprep.subr.bf16.mxu0 0
        %1833 = vmatpush1.bf16.msra.mxu0 0
        %1834 = vmatprep.subr.bf16.mxu0 0
        %1835 = vmatpush1.bf16.msra.mxu0 0
        %1836 = vmatprep.subr.bf16.mxu0 0
        %1837 = vmatpush1.bf16.msra.mxu0 0
        %1838 = vmatprep.subr.bf16.mxu0 0
        %1839 = vmatpush1.bf16.msra.mxu0 0
        %1840 = vmatprep.subr.bf16.mxu0 0
        %1841 = vmatpush1.bf16.msra.mxu0 0
        %1842 = vmatprep.subr.bf16.mxu0 0
        %1843 = vmatpush1.bf16.msra.mxu0 0
        %1844 = vmatprep.subr.bf16.mxu0 0
        %1845 = vmatpush1.bf16.msra.mxu0 0
        %1846 = vmatprep.mubr.bf16.mxu0 0
        %1847 = vmatmul.mubr.bf16.gmra.mrb[0].mxu0 %v1812
        %v1848 = vpop.f32.mrb[0].mxu0
        %v1849 = vadd.f32 %v1797, %v1848
        %v1850 = vpop.f32.mrb[0].mxu0
        %v1851 = vpop.f32.mrb[0].mxu0
        %v1852 = vadd.f32 %v1797, %v1851
        %v1853 = vpop.f32.mrb[0].mxu0
        %1854 = vdwg.mxu0
        %v1855 = vadd.f32 %v1849, %v763
        %v1856 = vadd.f32 %v1852, %v764
        %v1857 = vld [vmem:[%s682] sm:$0x1]
        %v1858 = vld [vmem:[%s685] sm:$0x1]
        %v1859 = vsel %vm789, %v1855, 0.0
        %1860 = vadd.xlane.f32.xlu0 %v1859
        %v1861 = vpop.xlane.xlu0 %1860
        %v1862 = vsel %vm789, %v1856, 0.0
        %1863 = vadd.xlane.f32.xlu0 %v1862
        %v1864 = vpop.xlane.xlu0 %1863
        %v1865 = vrcp.pop 32.0
        %v1866 = vmul.f32 %v1861, %v1865
        %v1867 = vmul.f32 %v1864, %v1865
        %v1868 = vsub.f32 %v1855, %v1866
        %v1869 = vsub.f32 %v1856, %v1867
        %v1870 = vmul.f32 %v1868, %v1868
        %v1871 = vmul.f32 %v1869, %v1869
        %v1872 = vsel %vm789, %v1870, 0.0
        %1873 = vadd.xlane.f32.xlu0 %v1872
        %v1874 = vpop.xlane.xlu0 %1873
        %v1875 = vsel %vm789, %v1871, 0.0
        %1876 = vadd.xlane.f32.xlu0 %v1875
        %v1877 = vpop.xlane.xlu0 %1876
        %v1878 = vmul.f32 %v1874, %v1865
        %v1879 = vmul.f32 %v1877, %v1865
        %v1880 = vadd.f32 %v1878, 1e-12
        %v1881 = vadd.f32 %v1879, 1e-12
        %v1882 = vrsqrt.pop %v1880
        %v1883 = vrsqrt.pop %v1881
        %v1884 = vmul.f32 %v1868, %v1882
        %v1885 = vmul.f32 %v1869, %v1883
        %v1887 = vlaneseq
        %v1888 = vshrl.u32 %v1887, 7
        %v1889 = vsub.s32 0, %v1888
        %v1890 = vrot.slane %v1857, %v1889
        %v1892 = vmul.f32 %v1884, %v1890
        %v1893 = vmul.f32 %v1885, %v1890
        %v1895 = vlaneseq
        %v1896 = vshrl.u32 %v1895, 7
        %v1897 = vsub.s32 0, %v1896
        %v1898 = vrot.slane %v1858, %v1897
        %v1900 = vadd.f32 %v1892, %v1898
        %v1901 = vadd.f32 %v1893, %v1898
        %v1902 = vpack.c.bf16 %v1901, %v1900
        %v1903 = vld [vmem:[%s690] sm:$0xf]
        %v1904 = vld [vmem:[%s690 + $0x4] sm:$0xf]
        %v1905 = vld [vmem:[%s690 + $0x8] sm:$0xf]
        %v1906 = vld [vmem:[%s690 + $0xc] sm:$0xf]
        %v1907 = vld [vmem:[%s693] sm:$0x1]
        %v1909 = vlaneseq
        %v1910 = vshrl.u32 %v1909, 7
        %v1911 = vsub.s32 0, %v1910
        %v1912 = vrot.slane %v1907, %v1911
        %v1918 = vunpack.c.l.b16 %v1903
        %v1919 = vunpack.c.l.b16 %v1904
        %v1920 = vunpack.c.l.b16 %v1905
        %v1921 = vunpack.c.l.b16 %v1906
        %v1922 = vpack.c.b16 %v1919, %v1918
        %v1923 = vpack.c.b16 %v1921, %v1920
        %v1927 = vsel %vm789, %v1902, 0
        %1929 = vmatprep.subr.bf16.mxu0 0
        %1930 = vmatpush1.bf16.msra.mxu0 %v1922
        %1931 = vmatprep.subr.bf16.mxu0 0
        %1932 = vmatpush1.bf16.msra.mxu0 %v1923
        %1933 = vmatprep.subr.bf16.mxu0 0
        %1934 = vmatpush1.bf16.msra.mxu0 0
        %1935 = vmatprep.subr.bf16.mxu0 0
        %1936 = vmatpush1.bf16.msra.mxu0 0
        %1937 = vmatprep.subr.bf16.mxu0 0
        %1938 = vmatpush1.bf16.msra.mxu0 0
        %1939 = vmatprep.subr.bf16.mxu0 0
        %1940 = vmatpush1.bf16.msra.mxu0 0
        %1941 = vmatprep.subr.bf16.mxu0 0
        %1942 = vmatpush1.bf16.msra.mxu0 0
        %1943 = vmatprep.subr.bf16.mxu0 0
        %1944 = vmatpush1.bf16.msra.mxu0 0
        %1945 = vmatprep.subr.bf16.mxu0 0
        %1946 = vmatpush1.bf16.msra.mxu0 0
        %1947 = vmatprep.subr.bf16.mxu0 0
        %1948 = vmatpush1.bf16.msra.mxu0 0
        %1949 = vmatprep.subr.bf16.mxu0 0
        %1950 = vmatpush1.bf16.msra.mxu0 0
        %1951 = vmatprep.subr.bf16.mxu0 0
        %1952 = vmatpush1.bf16.msra.mxu0 0
        %1953 = vmatprep.subr.bf16.mxu0 0
        %1954 = vmatpush1.bf16.msra.mxu0 0
        %1955 = vmatprep.subr.bf16.mxu0 0
        %1956 = vmatpush1.bf16.msra.mxu0 0
        %1957 = vmatprep.subr.bf16.mxu0 0
        %1958 = vmatpush1.bf16.msra.mxu0 0
        %1959 = vmatprep.subr.bf16.mxu0 0
        %1960 = vmatpush1.bf16.msra.mxu0 0
        %1961 = vmatprep.mubr.bf16.mxu0 0
        %1962 = vmatmul.mubr.bf16.gmra.mrb[0].mxu0 %v1927
        %v1963 = vpop.f32.mrb[0].mxu0
        %v1964 = vadd.f32 %v1912, %v1963
        %v1965 = vpop.f32.mrb[0].mxu0
        %v1966 = vpop.f32.mrb[0].mxu0
        %v1967 = vadd.f32 %v1912, %v1966
        %v1968 = vpop.f32.mrb[0].mxu0
        %1969 = vdwg.mxu0
        %v1970 = vmul.f32 %v1964, 0.5
        %v1971 = vmul.f32 %v1967, 0.5
        %v1972 = vmul.f32 %v1964, 0.70710677
        %v1973 = vmul.f32 %v1967, 0.70710677
        %v1974 = verf.f32.pop %v1972
        %v1975 = verf.f32.pop %v1973
        %v1976 = vadd.f32 %v1974, 1.0
        %v1977 = vadd.f32 %v1975, 1.0
        %v1978 = vmul.f32 %v1970, %v1976
        %v1979 = vmul.f32 %v1971, %v1977
        %v1980 = vpack.c.bf16 %v1979, %v1978
        %v1981 = vld [vmem:[%s698] sm:$0xf]
        %v1982 = vld [vmem:[%s698 + $0x4] sm:$0xf]
        %v1983 = vld [vmem:[%s698 + $0x8] sm:$0xf]
        %v1984 = vld [vmem:[%s698 + $0xc] sm:$0xf]
        %v1985 = vld [vmem:[%s698 + $0x10] sm:$0xf]
        %v1986 = vld [vmem:[%s698 + $0x14] sm:$0xf]
        %v1987 = vld [vmem:[%s698 + $0x18] sm:$0xf]
        %v1988 = vld [vmem:[%s698 + $0x1c] sm:$0xf]
        %v1989 = vld [vmem:[%s701] sm:$0x1]
        %v1991 = vlaneseq
        %v1992 = vshrl.u32 %v1991, 7
        %v1993 = vsub.s32 0, %v1992
        %v1994 = vrot.slane %v1989, %v1993
        %v2004 = vunpack.c.l.b16 %v1981
        %v2005 = vunpack.c.l.b16 %v1982
        %v2006 = vunpack.c.l.b16 %v1983
        %v2007 = vunpack.c.l.b16 %v1984
        %v2008 = vunpack.c.l.b16 %v1985
        %v2009 = vunpack.c.l.b16 %v1986
        %v2010 = vunpack.c.l.b16 %v1987
        %v2011 = vunpack.c.l.b16 %v1988
        %v2012 = vpack.c.b16 %v2005, %v2004
        %v2013 = vpack.c.b16 %v2007, %v2006
        %v2014 = vpack.c.b16 %v2009, %v2008
        %v2015 = vpack.c.b16 %v2011, %v2010
        %vm2020 = vcmask 523264
        %v2022 = vsel %vm2020, %v1980, 0
        %2024 = vmatprep.subr.bf16.mxu0 0
        %2025 = vmatpush1.bf16.msra.mxu0 %v2012
        %2026 = vmatprep.subr.bf16.mxu0 0
        %2027 = vmatpush1.bf16.msra.mxu0 %v2013
        %2028 = vmatprep.subr.bf16.mxu0 0
        %2029 = vmatpush1.bf16.msra.mxu0 %v2014
        %2030 = vmatprep.subr.bf16.mxu0 0
        %2031 = vmatpush1.bf16.msra.mxu0 %v2015
        %2032 = vmatprep.subr.bf16.mxu0 0
        %2033 = vmatpush1.bf16.msra.mxu0 0
        %2034 = vmatprep.subr.bf16.mxu0 0
        %2035 = vmatpush1.bf16.msra.mxu0 0
        %2036 = vmatprep.subr.bf16.mxu0 0
        %2037 = vmatpush1.bf16.msra.mxu0 0
        %2038 = vmatprep.subr.bf16.mxu0 0
        %2039 = vmatpush1.bf16.msra.mxu0 0
        %2040 = vmatprep.subr.bf16.mxu0 0
        %2041 = vmatpush1.bf16.msra.mxu0 0
        %2042 = vmatprep.subr.bf16.mxu0 0
        %2043 = vmatpush1.bf16.msra.mxu0 0
        %2044 = vmatprep.subr.bf16.mxu0 0
        %2045 = vmatpush1.bf16.msra.mxu0 0
        %2046 = vmatprep.subr.bf16.mxu0 0
        %2047 = vmatpush1.bf16.msra.mxu0 0
        %2048 = vmatprep.subr.bf16.mxu0 0
        %2049 = vmatpush1.bf16.msra.mxu0 0
        %2050 = vmatprep.subr.bf16.mxu0 0
        %2051 = vmatpush1.bf16.msra.mxu0 0
        %2052 = vmatprep.subr.bf16.mxu0 0
        %2053 = vmatpush1.bf16.msra.mxu0 0
        %2054 = vmatprep.subr.bf16.mxu0 0
        %2055 = vmatpush1.bf16.msra.mxu0 0
        %2056 = vmatprep.mubr.bf16.mxu0 0
        %2057 = vmatmul.mubr.bf16.gmra.mrb[0].mxu0 %v2022
        %v2058 = vpop.f32.mrb[0].mxu0
        %v2059 = vadd.f32 %v1994, %v2058
        %v2060 = vpop.f32.mrb[0].mxu0
        %v2061 = vpop.f32.mrb[0].mxu0
        %v2062 = vadd.f32 %v1994, %v2061
        %v2063 = vpop.f32.mrb[0].mxu0
        %2064 = vdwg.mxu0
        %v2065 = vadd.f32 %v2059, %v1900
        %v2066 = vadd.f32 %v2062, %v1901
        %v2067 = vld [vmem:[%s704] sm:$0x1]
        %v2068 = vld [vmem:[%s707] sm:$0x1]
        %v2069 = vsel %vm789, %v2065, 0.0
        %2070 = vadd.xlane.f32.xlu0 %v2069
        %v2071 = vpop.xlane.xlu0 %2070
        %v2072 = vsel %vm789, %v2066, 0.0
        %2073 = vadd.xlane.f32.xlu0 %v2072
        %v2074 = vpop.xlane.xlu0 %2073
        %v2075 = vmul.f32 %v2071, %v1865
        %v2076 = vmul.f32 %v2074, %v1865
        %v2077 = vsub.f32 %v2065, %v2075
        %v2078 = vsub.f32 %v2066, %v2076
        %v2079 = vmul.f32 %v2077, %v2077
        %v2080 = vmul.f32 %v2078, %v2078
        %v2081 = vsel %vm789, %v2079, 0.0
        %2082 = vadd.xlane.f32.xlu0 %v2081
        %v2083 = vpop.xlane.xlu0 %2082
        %v2084 = vsel %vm789, %v2080, 0.0
        %2085 = vadd.xlane.f32.xlu0 %v2084
        %v2086 = vpop.xlane.xlu0 %2085
        %v2087 = vmul.f32 %v2083, %v1865
        %v2088 = vmul.f32 %v2086, %v1865
        %v2089 = vadd.f32 %v2087, 1e-12
        %v2090 = vadd.f32 %v2088, 1e-12
        %v2091 = vrsqrt.pop %v2089
        %v2092 = vrsqrt.pop %v2090
        %v2093 = vmul.f32 %v2077, %v2091
        %v2094 = vmul.f32 %v2078, %v2092
        %v2096 = vlaneseq
        %v2097 = vshrl.u32 %v2096, 7
        %v2098 = vsub.s32 0, %v2097
        %v2099 = vrot.slane %v2067, %v2098
        %v2101 = vmul.f32 %v2093, %v2099
        %v2102 = vmul.f32 %v2094, %v2099
        %v2104 = vlaneseq
        %v2105 = vshrl.u32 %v2104, 7
        %v2106 = vsub.s32 0, %v2105
        %v2107 = vrot.slane %v2068, %v2106
        %v2109 = vadd.f32 %v2101, %v2107
        %v2110 = vadd.f32 %v2102, %v2107
        %2111 = vst.msk [vmem:[#allocation2] sm:$0xff] %vm789, %v2109
        %2112 = vst.msk [vmem:[#allocation2 + $0x8] sm:$0xff] %vm789, %v2110
        %2113 = vst.msk [vmem:[#allocation9] sm:$0xff] %vm789, %v2109
        %2114 = vst.msk [vmem:[#allocation9 + $0x8] sm:$0xff] %vm789, %v2110
        // Predicated region
        $region97: #{tpu_custom_call.1} parent=83 // pred_check
          %p2115 = pneg %p439
        $region98: #{tpu_custom_call.1} parent=83 // pred_check_branch
          %2117 = sbr.rel (%p2115) target = $region100
        $region99: #{tpu_custom_call.1} parent=83 // pred_region
          %s2119 = ssub.s32 256, 256
          %2120 = vsyncadd [#allocation6], %s2119
          %s2121 = sshll.u32 [#allocation9], 4
          %s2122 = int_to_ptr.vmem [resolvable:$true] %s2121
          %2127 = dma.vmem_to_hbm [thread:$0]  %s2122, 256, %s16, [#allocation6], 128, 128, 8
        $region100: #{tpu_custom_call.1} parent=83 // pred_fallthru
          _
        // Predicated region
        $region101: #{tpu_custom_call.1} parent=83 // pred_check
          %p2128 = pneg %p439
        $region102: #{tpu_custom_call.1} parent=83 // pred_check_branch
          %2130 = sbr.rel (%p2128) target = $region104
        $region103: #{tpu_custom_call.1} parent=83 // pred_region
          %2131 = dma.done [#allocation6], 256
        $region104: #{tpu_custom_call.1} parent=83 // pred_fallthru
          _
      $region84: #{tpu_custom_call.1} parent=5 // pred_fallthru
        _
      %p2132 = scmp.le.s32.totalorder 2, %s25
      // Predicated region
      $region105: #{tpu_custom_call.1} parent=5 // pred_check
        %p2133 = pneg %p2132
      $region106: #{tpu_custom_call.1} parent=5 // pred_check_branch
        %2135 = sbr.rel (%p2133) target = $region108
      $region107: #{tpu_custom_call.1} parent=5 // pred_region
        %s2136 = ssub.s32 %s25, 2
      $region108: #{tpu_custom_call.1} parent=5 // pred_fallthru
        _
    $region6: #{tpu_custom_call.1} parent=1 // loop_footer
      %s29 = sadd.s32 1, %s25
    $region7: #{tpu_custom_call.1} parent=1 // loop_footer_branch
      %24 = sbr.rel target = $region3
    $region8: #{tpu_custom_call.1} parent=1 // loop_exit
      _
    %2137 = vsyncpa [#allocation5], 1
    %s2138 = scalar_lea.sflag [#allocation5], 1
    %2139 = vsyncpa %s2138, 1
    %2140 = vsyncpa [#allocation8], 1
    %2141 = vsyncpa [#allocation6], 1
    %s2142 = scalar_lea.sflag [#allocation6], 1
    %2143 = vsyncpa %s2142, 1

</llo_original>
